<compile_context>
chip_gen: v6e
topology: v6e:2x2x1
jax: 0.10.0
libtpu: 0.0.40
codegen_flags: <defaults>
</compile_context>

<pallas_src>
import functools
import math

import jax
import jax.numpy as jnp
from jax.experimental import pallas as pl
from jax.experimental.pallas import tpu as pltpu


# ---------------------------------------------------------------------------
# Fused LGConv kernel (one grid step = block_b batch elements, both paths)
# ---------------------------------------------------------------------------
def _lgconv_kernel(patches_ref, wemb_ref, bemb_ref, wqkvg_ref, wqkvl_ref,
                   w2gt_ref, b2g_ref,
                   ysum_ref, gattn_ref, lattn_ref,
                   *, heads, wordsize, c, dwh, ks3, bblk):
    f32 = jnp.float32
    bf16 = jnp.bfloat16
    nt = (((1,), (1,)), ((), ()))          # contract last dims of both operands

    P = patches_ref[0]                                            # (bblk*c*dwh, ks3) bf16

    # ---- shared embedding: Conv3d(1, ., ks, stride=ks) for BOTH paths, one matmul
    e_all = jnp.dot(P, wemb_ref[...], preferred_element_type=f32) + bemb_ref[...]
    e_g = e_all[:, :heads].astype(bf16)                           # (R, H)
    e_l = e_all[:, heads:].astype(bf16)                           # (R, W)

    # ---- merged 1x1x1 q/k/v projections: one dot per path, then slice
    qkv_g = jax.lax.dot_general(e_g, wqkvg_ref[...], nt,
                                preferred_element_type=f32)       # (R, 2H+1)
    Qg = qkv_g[:, :heads] * (1.0 / math.sqrt(dwh))                # temperature sqrt(dwh)
    Kg = qkv_g[:, heads:2 * heads]
    Vg = qkv_g[:, 2 * heads:2 * heads + 1]                        # (R, 1)

    qkv_l = jax.lax.dot_general(e_l, wqkvl_ref[...], nt,
                                preferred_element_type=f32)       # (R, 2W+ks3)
    Ql = qkv_l[:, :wordsize] * (1.0 / math.sqrt(wordsize))        # temperature sqrt(W)
    Kl = qkv_l[:, wordsize:2 * wordsize]
    Vl = qkv_l[:, 2 * wordsize:]                                  # (R, ks3)

    og_rows = []   # per (bb, i): (dwh, H)   -> one wide unembed matmul at the end
    yl_rows = []   # per (bb, i): (dwh, ks3)

    for bb in range(bblk):
        base = bb * c * dwh
        g_attn_rows = []   # (1, H)   per (i, j)
        l_attn_cols = []   # (dwh, 1) per (i, j)
        for i in range(c):
            ri = base + i * dwh
            qg_i = Qg[ri:ri + dwh, :]                             # (dwh, H)
            ql_i = Ql[ri:ri + dwh, :]                             # (dwh, W)

            # scores over j (global: sublane reduce; local: lane reduce)
            sg, sl = [], []
            for j in range(c):
                rj = base + j * dwh
                sg.append(jnp.sum(qg_i * Kg[rj:rj + dwh, :],
                                  axis=0, keepdims=True))         # (1, H)
                sl.append(jnp.sum(ql_i * Kl[rj:rj + dwh, :],
                                  axis=-1, keepdims=True))        # (dwh, 1)

            # -- global softmax over j (per head), no lane concats in compute
            mg = sg[0]
            for j in range(1, c):
                mg = jnp.maximum(mg, sg[j])
            pg = [jnp.exp(s - mg) for s in sg]
            dg = pg[0]
            for j in range(1, c):
                dg = dg + pg[j]
            inv_g = pl.reciprocal(dg, approx=True)
            ag = [p * inv_g for p in pg]                          # (1, H) each
            g_attn_rows.extend(ag)

            # -- local softmax over j (per patch)
            ml = sl[0]
            for j in range(1, c):
                ml = jnp.maximum(ml, sl[j])
            pls = [jnp.exp(s - ml) for s in sl]
            dl = pls[0]
            for j in range(1, c):
                dl = dl + pls[j]
            inv_l = pl.reciprocal(dl, approx=True)
            al = [p * inv_l for p in pls]                         # (dwh, 1) each
            l_attn_cols.extend(al)

            # -- value contractions (rank-c broadcast FMA; global v shared across heads)
            og_i = ag[0] * Vg[base:base + dwh, :]                 # (dwh, H)
            ol_i = al[0] * Vl[base:base + dwh, :]                 # (dwh, ks3)
            for j in range(1, c):
                rj = base + j * dwh
                og_i = og_i + ag[j] * Vg[rj:rj + dwh, :]
                ol_i = ol_i + al[j] * Vl[rj:rj + dwh, :]
            og_rows.append(og_i)
            yl_rows.append(ol_i)

        # lane-dense attention-map stores: ONE store per path per batch element
        gattn_ref[bb] = jnp.concatenate(g_attn_rows, axis=-1)     # (1, c*c*H)
        lattn_ref[bb] = jnp.concatenate(l_attn_cols, axis=-1)     # (dwh, c*c)

    # ---- global unembedding (Conv2d(heads, ks^3, 1)) fused with the local output:
    #      one wide matmul + ONE lane-dense (ks3-wide) store for the whole step.
    og_all = jnp.concatenate(og_rows, axis=0)                     # (R, H)  8-row aligned
    yl_all = jnp.concatenate(yl_rows, axis=0)                     # (R, ks3)
    yg_all = jnp.dot(og_all.astype(bf16), w2gt_ref[...],
                     preferred_element_type=f32) + b2g_ref[...]   # (R, ks3)
    ysum_ref[0] = yg_all + yl_all


def _pick_block_b(b, cap=16):
    """Largest batch block that (a) divides b, (b) keeps >= 2 grid steps for the
    v7x two-TensorCore 'parallel' sharding, (c) bounds the in-kernel unroll."""
    best = 1
    for cand in range(1, min(b, cap) + 1):
        if b % cand == 0 and b // cand >= 2:
            best = cand
    return best


# ---------------------------------------------------------------------------
# Forward pass (Pallas kernel + thin layout glue)
# ---------------------------------------------------------------------------
def lgconv_forward(params, x, *, heads, wordsize, ks, block_b=None):
    b, c, d, w_, h = x.shape
    assert d % ks == 0 and w_ % ks == 0 and h % ks == 0, "spatial dims must divide ks"
    Dp, Wp, Hp = d // ks, w_ // ks, h // ks
    dwh = Dp * Wp * Hp
    ks3 = ks ** 3
    cd = c * dwh

    if block_b is None:
        block_b = _pick_block_b(b)
    assert b % block_b == 0
    steps = b // block_b

    bf = jnp.bfloat16
    # patch extraction (channel-major rows within each batch element, both paths)
    patches = x.reshape(b, c, Dp, ks, Wp, ks, Hp, ks)
    patches = patches.transpose(0, 1, 2, 4, 6, 3, 5, 7)
    patches = patches.reshape(steps, block_b * cd, ks3).astype(bf)

    # merged weight operands (tiny, one-time)
    wemb = jnp.concatenate([params["g_w1"].reshape(heads, ks3).T,
                            params["l_w1"].reshape(wordsize, ks3).T],
                           axis=1).astype(bf)                       # (ks3, H+W)
    bemb = jnp.concatenate([params["g_b1"], params["l_b1"]]).reshape(1, heads + wordsize)
    wqkv_g = jnp.concatenate([params["g_wq"], params["g_wk"], params["g_wv"]],
                             axis=0).astype(bf)                     # (2H+1, H)
    wqkv_l = jnp.concatenate([params["l_wq"], params["l_wk"], params["l_wv"]],
                             axis=0).astype(bf)                     # (2W+ks3, W)
    w2gt = params["g_w2"].T.astype(bf)                              # (H, ks3)
    b2g = params["g_b2"].reshape(1, ks3)

    kern = functools.partial(_lgconv_kernel, heads=heads, wordsize=wordsize,
                             c=c, dwh=dwh, ks3=ks3, bblk=block_b)

    def wspec(shape):
        return pl.BlockSpec(shape, lambda bi: (0,) * len(shape))

    ysum, gattn_s, lattn_s = pl.pallas_call(
        kern,
        grid=(steps,),
        in_specs=[
            pl.BlockSpec((1, block_b * cd, ks3), lambda bi: (bi, 0, 0)),   # patches
            wspec((ks3, heads + wordsize)),                                # [w1g|w1l]
            wspec((1, heads + wordsize)),                                  # [b1g|b1l]
            wspec((2 * heads + 1, heads)),                                 # [wq;wk;wv]_g
            wspec((2 * wordsize + ks3, wordsize)),                         # [wq;wk;wv]_l
            wspec((heads, ks3)),                                           # w2_g^T
            wspec((1, ks3)),                                               # b2_g
        ],
        out_specs=(
            pl.BlockSpec((1, block_b * cd, ks3), lambda bi: (bi, 0, 0)),
            pl.BlockSpec((block_b, 1, c * c * heads), lambda bi: (bi, 0, 0)),
            pl.BlockSpec((block_b, dwh, c * c), lambda bi: (bi, 0, 0)),
        ),
        out_shape=(
            jax.ShapeDtypeStruct((steps, block_b * cd, ks3), jnp.float32),  # yg+yl
            jax.ShapeDtypeStruct((b, 1, c * c * heads), jnp.float32),       # global attn
            jax.ShapeDtypeStruct((b, dwh, c * c), jnp.float32),             # local attn
        ),
        compiler_params=pltpu.CompilerParams(dimension_semantics=("parallel",)),
    )(patches, wemb, bemb, wqkv_g, wqkv_l, w2gt, b2g)

    # attention maps back to the PyTorch layouts
    gattn = gattn_s.reshape(b, c, c, heads).transpose(0, 3, 1, 2)   # (b, H, c, c)
    lattn = lattn_s.reshape(b, dwh, c, c)                           # (b, dwh, c, c)

    # single pixel-shuffle transpose shared by both paths (kernel already summed them)
    y3 = ysum.reshape(b, c, Dp, Wp, Hp, ks, ks, ks)
    y3 = y3.transpose(0, 1, 2, 5, 3, 6, 4, 7).reshape(b, c, d, w_, h)

    # LGConv: (local y3 + x) + (global y3 + x)
    y = y3 + 2.0 * x
    return y, lattn, gattn


# ---------------------------------------------------------------------------
# Parameters (deterministic init; shapes mirror the PyTorch __init__)
# ---------------------------------------------------------------------------
def init_params(key, heads, wordsize, ks):
    ks3 = ks ** 3
    keys = jax.random.split(key, 12)
    f = jnp.float32

    def n(k, shape, scale):
        return scale * jax.random.normal(k, shape, dtype=f)

    return {
        # GlobalConvSelfAttention
        "g_w1": n(keys[0], (heads, 1, ks, ks, ks), 1.0 / math.sqrt(ks3)),
        "g_b1": n(keys[1], (heads,), 0.02),
        "g_wq": n(keys[2], (heads, heads), 1.0 / math.sqrt(heads)),
        "g_wk": n(keys[3], (heads, heads), 1.0 / math.sqrt(heads)),
        "g_wv": n(keys[4], (1, heads), 1.0 / math.sqrt(heads)),
        "g_w2": n(keys[5], (ks3, heads), 1.0 / math.sqrt(heads)),
        "g_b2": n(keys[6], (ks3,), 0.02),
        # LocalConvSelfAttention
        "l_w1": n(keys[7], (wordsize, 1, ks, ks, ks), 1.0 / math.sqrt(ks3)),
        "l_b1": n(keys[8], (wordsize,), 0.02),
        "l_wq": n(keys[9], (wordsize, wordsize), 1.0 / math.sqrt(wordsize)),
        "l_wk": n(keys[10], (wordsize, wordsize), 1.0 / math.sqrt(wordsize)),
        "l_wv": n(keys[11], (ks3, wordsize), 1.0 / math.sqrt(wordsize)),
    }


# ---------------------------------------------------------------------------
# Pure-JAX reference (mirrors the PyTorch LGConv op-for-op) for validation
# ---------------------------------------------------------------------------
def ref_forward(params, x, *, heads, wordsize, ks):
    b, c, d, w_, h = x.shape
    Dp, Wp, Hp = d // ks, w_ // ks, h // ks
    dwh = Dp * Wp * Hp
    ks3 = ks ** 3
    xin = x.reshape(b * c, 1, d, w_, h)
    dn = ("NCDHW", "OIDHW", "NCDHW")

    # ---- GlobalConvSelfAttention ----
    e = jax.lax.conv_general_dilated(xin, params["g_w1"], (ks, ks, ks), "VALID",
                                     dimension_numbers=dn)
    e = e + params["g_b1"].reshape(1, heads, 1, 1, 1)
    e = e.reshape(b, c, heads, dwh)                                 # e[b,i,a,s]
    q = jnp.einsum("ha,bias->bhis", params["g_wq"], e)
    k = jnp.einsum("ha,bias->bhis", params["g_wk"], e)
    v = jnp.einsum("ha,bias->bhis", params["g_wv"], e)              # (b,1,c,dwh)
    gattn = jax.nn.softmax(
        jnp.einsum("bhis,bhjs->bhij", q / (dwh ** 0.5), k), axis=-1)
    go = jnp.einsum("bhij,bjs->bhis", gattn, v[:, 0])
    y2 = (jnp.einsum("th,bhis->btis", params["g_w2"], go)
          + params["g_b2"].reshape(1, ks3, 1, 1))
    y2 = y2.reshape(b, ks, ks, ks, c, Dp, Wp, Hp)
    gy = y2.transpose(0, 4, 5, 1, 6, 2, 7, 3).reshape(b, c, d, w_, h) + x

    # ---- LocalConvSelfAttention ----
    el = jax.lax.conv_general_dilated(xin, params["l_w1"], (ks, ks, ks), "VALID",
                                      dimension_numbers=dn)
    el = el + params["l_b1"].reshape(1, wordsize, 1, 1, 1)
    el = el.reshape(b, c, wordsize, dwh)                            # el[b,i,a,p]
    ql = jnp.einsum("wa,biap->bpiw", params["l_wq"], el)
    kl = jnp.einsum("wa,biap->bpiw", params["l_wk"], el)
    vl = jnp.einsum("ta,biap->bpit", params["l_wv"], el)
    lattn = jax.nn.softmax(
        jnp.einsum("bpiw,bpjw->bpij", ql / (wordsize ** 0.5), kl), axis=-1)
    lo = jnp.einsum("bpij,bpjt->bpit", lattn, vl)                   # (b,dwh,c,ks3)
    lo = lo.reshape(b, Dp, Wp, Hp, c, ks, ks, ks)
    ly = lo.transpose(0, 4, 1, 5, 2, 6, 3, 7).reshape(b, c, d, w_, h) + x

    return ly + gy, lattn, gattn


# ---------------------------------------------------------------------------
if __name__ == "__main__":
    heads, wordsize, ks = 16, 16, 4
    b, c, d, w_, h = 2, 3, 8, 8, 8

    key = jax.random.PRNGKey(0)
    kx, kp = jax.random.split(key)
    x = jax.random.normal(kx, (b, c, d, w_, h), dtype=jnp.float32)
    params = init_params(kp, heads, wordsize, ks)

    fwd = jax.jit(functools.partial(lgconv_forward, heads=heads,
                                    wordsize=wordsize, ks=ks))
    y, lattn, gattn = fwd(params, x)
    jax.block_until_ready((y, lattn, gattn))

    with jax.default_matmul_precision("float32"):
        y_ref, lattn_ref, gattn_ref = jax.jit(functools.partial(
            ref_forward, heads=heads, wordsize=wordsize, ks=ks))(params, x)
    jax.block_until_ready((y_ref, lattn_ref, gattn_ref))

    dwh = (d // ks) * (w_ // ks) * (h // ks)
    assert y.shape == x.shape
    assert gattn.shape == (b, heads, c, c)
    assert lattn.shape == (b, dwh, c, c)

    # Tolerances sized for bf16 MXU operands (f32 accumulate) vs. the f32 reference.
    max_err = float(jnp.max(jnp.abs(y - y_ref)))
    rel_err = float(jnp.linalg.norm(y - y_ref) / jnp.linalg.norm(y_ref))
    assert jnp.allclose(y, y_ref, rtol=5e-2, atol=8e-2), (max_err, rel_err)
    assert rel_err < 2e-2, rel_err
    assert jnp.allclose(gattn, gattn_ref, rtol=3e-2, atol=3e-2), \
        float(jnp.max(jnp.abs(gattn - gattn_ref)))
    assert jnp.allclose(lattn, lattn_ref, rtol=3e-2, atol=3e-2), \
        float(jnp.max(jnp.abs(lattn - lattn_ref)))
    print("KERNEL_OK")
</pallas_src>

<mosaic_0001>
module attributes {stable_mosaic.version = 11 : i64} {
  func.func @_lgconv_kernel(%arg0: i32, %arg1: memref<1x24x64xbf16, #tpu.memory_space<vmem>>, %arg2: memref<64x32xbf16, #tpu.memory_space<vmem>>, %arg3: memref<1x32xf32, #tpu.memory_space<vmem>>, %arg4: memref<33x16xbf16, #tpu.memory_space<vmem>>, %arg5: memref<96x16xbf16, #tpu.memory_space<vmem>>, %arg6: memref<16x64xbf16, #tpu.memory_space<vmem>>, %arg7: memref<1x64xf32, #tpu.memory_space<vmem>>, %arg8: memref<1x24x64xf32, #tpu.memory_space<vmem>>, %arg9: memref<1x1x144xf32, #tpu.memory_space<vmem>>, %arg10: memref<1x8x9xf32, #tpu.memory_space<vmem>>) attributes {dimension_semantics = [#tpu.dimension_semantics<parallel>], iteration_bounds = array<i64: 2>, scalar_prefetch = 0 : i64, scratch_operands = 0 : i64, tpu.core_type = #tpu.core_type<tc>, window_params = [{transform_indices = @transform_0, window_bounds = array<i64: 1, 24, 64>}, {pipeline_mode = #tpu.pipeline_mode<synchronous>, transform_indices = @transform_1, window_bounds = array<i64: 64, 32>}, {pipeline_mode = #tpu.pipeline_mode<synchronous>, transform_indices = @transform_2, window_bounds = array<i64: 1, 32>}, {pipeline_mode = #tpu.pipeline_mode<synchronous>, transform_indices = @transform_3, window_bounds = array<i64: 33, 16>}, {pipeline_mode = #tpu.pipeline_mode<synchronous>, transform_indices = @transform_4, window_bounds = array<i64: 96, 16>}, {pipeline_mode = #tpu.pipeline_mode<synchronous>, transform_indices = @transform_5, window_bounds = array<i64: 16, 64>}, {pipeline_mode = #tpu.pipeline_mode<synchronous>, transform_indices = @transform_6, window_bounds = array<i64: 1, 64>}, {transform_indices = @transform_7, window_bounds = array<i64: 1, 24, 64>}, {transform_indices = @transform_8, window_bounds = array<i64: 1, 1, 144>}, {transform_indices = @transform_9, window_bounds = array<i64: 1, 8, 9>}]} {
    %c0 = arith.constant 0 : index
    %c0_0 = arith.constant 0 : index
    %c0_1 = arith.constant 0 : index
    %0 = vector.load %arg1[%c0, %c0_0, %c0_1] : memref<1x24x64xbf16, #tpu.memory_space<vmem>>, vector<1x24x64xbf16>
    %1 = vector.shape_cast %0 : vector<1x24x64xbf16> to vector<24x64xbf16>
    %c0_2 = arith.constant 0 : index
    %c0_3 = arith.constant 0 : index
    %2 = vector.load %arg2[%c0_2, %c0_3] : memref<64x32xbf16, #tpu.memory_space<vmem>>, vector<64x32xbf16>
    %cst = arith.constant dense<0.000000e+00> : vector<24x32xf32>
    %3 = tpu.matmul %1, %2, %cst {dimension_numbers = #tpu.dot_dimension_numbers<[1], [0], [0], [1], [0, 0, 1, 1], [], []>} : vector<24x64xbf16>, vector<64x32xbf16>, vector<24x32xf32> -> vector<24x32xf32>
    %c0_4 = arith.constant 0 : index
    %c0_5 = arith.constant 0 : index
    %4 = vector.load %arg3[%c0_4, %c0_5] : memref<1x32xf32, #tpu.memory_space<vmem>>, vector<1x32xf32>
    %5 = vector.broadcast %4 : vector<1x32xf32> to vector<24x32xf32>
    %6 = arith.addf %3, %5 : vector<24x32xf32>
    %7 = vector.extract_strided_slice %6 {offsets = [0, 0], sizes = [24, 16], strides = [1, 1]} : vector<24x32xf32> to vector<24x16xf32>
    %8 = arith.truncf %7 : vector<24x16xf32> to vector<24x16xbf16>
    %9 = vector.extract_strided_slice %6 {offsets = [0, 16], sizes = [24, 16], strides = [1, 1]} : vector<24x32xf32> to vector<24x16xf32>
    %10 = arith.truncf %9 : vector<24x16xf32> to vector<24x16xbf16>
    %c0_6 = arith.constant 0 : index
    %c0_7 = arith.constant 0 : index
    %11 = vector.load %arg4[%c0_6, %c0_7] : memref<33x16xbf16, #tpu.memory_space<vmem>>, vector<33x16xbf16>
    %cst_8 = arith.constant dense<0.000000e+00> : vector<24x33xf32>
    %12 = tpu.matmul %8, %11, %cst_8 {dimension_numbers = #tpu.dot_dimension_numbers<[1], [1], [0], [0], [0, 0, 1, 0], [], []>} : vector<24x16xbf16>, vector<33x16xbf16>, vector<24x33xf32> -> vector<24x33xf32>
    %13 = vector.extract_strided_slice %12 {offsets = [0, 0], sizes = [24, 16], strides = [1, 1]} : vector<24x33xf32> to vector<24x16xf32>
    %cst_9 = arith.constant 0.353553385 : f32
    %14 = vector.broadcast %cst_9 : f32 to vector<24x16xf32>
    %15 = arith.mulf %13, %14 : vector<24x16xf32>
    %16 = vector.extract_strided_slice %12 {offsets = [0, 16], sizes = [24, 16], strides = [1, 1]} : vector<24x33xf32> to vector<24x16xf32>
    %17 = vector.extract_strided_slice %12 {offsets = [0, 32], sizes = [24, 1], strides = [1, 1]} : vector<24x33xf32> to vector<24x1xf32>
    %c0_10 = arith.constant 0 : index
    %c0_11 = arith.constant 0 : index
    %18 = vector.load %arg5[%c0_10, %c0_11] : memref<96x16xbf16, #tpu.memory_space<vmem>>, vector<96x16xbf16>
    %cst_12 = arith.constant dense<0.000000e+00> : vector<24x96xf32>
    %19 = tpu.matmul %10, %18, %cst_12 {dimension_numbers = #tpu.dot_dimension_numbers<[1], [1], [0], [0], [0, 0, 1, 0], [], []>} : vector<24x16xbf16>, vector<96x16xbf16>, vector<24x96xf32> -> vector<24x96xf32>
    %20 = vector.extract_strided_slice %19 {offsets = [0, 0], sizes = [24, 16], strides = [1, 1]} : vector<24x96xf32> to vector<24x16xf32>
    %cst_13 = arith.constant 2.500000e-01 : f32
    %21 = vector.broadcast %cst_13 : f32 to vector<24x16xf32>
    %22 = arith.mulf %20, %21 : vector<24x16xf32>
    %23 = vector.extract_strided_slice %19 {offsets = [0, 16], sizes = [24, 16], strides = [1, 1]} : vector<24x96xf32> to vector<24x16xf32>
    %24 = vector.extract_strided_slice %19 {offsets = [0, 32], sizes = [24, 64], strides = [1, 1]} : vector<24x96xf32> to vector<24x64xf32>
    %25 = vector.extract_strided_slice %15 {offsets = [0, 0], sizes = [8, 16], strides = [1, 1]} : vector<24x16xf32> to vector<8x16xf32>
    %26 = vector.extract_strided_slice %22 {offsets = [0, 0], sizes = [8, 16], strides = [1, 1]} : vector<24x16xf32> to vector<8x16xf32>
    %27 = vector.extract_strided_slice %16 {offsets = [0, 0], sizes = [8, 16], strides = [1, 1]} : vector<24x16xf32> to vector<8x16xf32>
    %28 = arith.mulf %25, %27 : vector<8x16xf32>
    %cst_14 = arith.constant dense<0.000000e+00> : vector<16xf32>
    %29 = vector.multi_reduction <add>, %28, %cst_14 [0] : vector<8x16xf32> to vector<16xf32>
    %30 = vector.shape_cast %29 : vector<16xf32> to vector<1x16xf32>
    %31 = vector.extract_strided_slice %23 {offsets = [0, 0], sizes = [8, 16], strides = [1, 1]} : vector<24x16xf32> to vector<8x16xf32>
    %32 = arith.mulf %26, %31 : vector<8x16xf32>
    %cst_15 = arith.constant dense<0.000000e+00> : vector<8xf32>
    %33 = vector.multi_reduction <add>, %32, %cst_15 [1] : vector<8x16xf32> to vector<8xf32>
    %34 = vector.shape_cast %33 : vector<8xf32> to vector<8x1xf32>
    %35 = vector.extract_strided_slice %16 {offsets = [8, 0], sizes = [8, 16], strides = [1, 1]} : vector<24x16xf32> to vector<8x16xf32>
    %36 = arith.mulf %25, %35 : vector<8x16xf32>
    %cst_16 = arith.constant dense<0.000000e+00> : vector<16xf32>
    %37 = vector.multi_reduction <add>, %36, %cst_16 [0] : vector<8x16xf32> to vector<16xf32>
    %38 = vector.shape_cast %37 : vector<16xf32> to vector<1x16xf32>
    %39 = vector.extract_strided_slice %23 {offsets = [8, 0], sizes = [8, 16], strides = [1, 1]} : vector<24x16xf32> to vector<8x16xf32>
    %40 = arith.mulf %26, %39 : vector<8x16xf32>
    %cst_17 = arith.constant dense<0.000000e+00> : vector<8xf32>
    %41 = vector.multi_reduction <add>, %40, %cst_17 [1] : vector<8x16xf32> to vector<8xf32>
    %42 = vector.shape_cast %41 : vector<8xf32> to vector<8x1xf32>
    %43 = vector.extract_strided_slice %16 {offsets = [16, 0], sizes = [8, 16], strides = [1, 1]} : vector<24x16xf32> to vector<8x16xf32>
    %44 = arith.mulf %25, %43 : vector<8x16xf32>
    %cst_18 = arith.constant dense<0.000000e+00> : vector<16xf32>
    %45 = vector.multi_reduction <add>, %44, %cst_18 [0] : vector<8x16xf32> to vector<16xf32>
    %46 = vector.shape_cast %45 : vector<16xf32> to vector<1x16xf32>
    %47 = vector.extract_strided_slice %23 {offsets = [16, 0], sizes = [8, 16], strides = [1, 1]} : vector<24x16xf32> to vector<8x16xf32>
    %48 = arith.mulf %26, %47 : vector<8x16xf32>
    %cst_19 = arith.constant dense<0.000000e+00> : vector<8xf32>
    %49 = vector.multi_reduction <add>, %48, %cst_19 [1] : vector<8x16xf32> to vector<8xf32>
    %50 = vector.shape_cast %49 : vector<8xf32> to vector<8x1xf32>
    %51 = arith.maximumf %30, %38 : vector<1x16xf32>
    %52 = arith.maximumf %51, %46 : vector<1x16xf32>
    %53 = arith.subf %30, %52 : vector<1x16xf32>
    %54 = math.exp %53 : vector<1x16xf32>
    %55 = arith.subf %38, %52 : vector<1x16xf32>
    %56 = math.exp %55 : vector<1x16xf32>
    %57 = arith.subf %46, %52 : vector<1x16xf32>
    %58 = math.exp %57 : vector<1x16xf32>
    %59 = arith.addf %54, %56 : vector<1x16xf32>
    %60 = arith.addf %59, %58 : vector<1x16xf32>
    %61 = tpu.reciprocal %60 {approx = true} : vector<1x16xf32> -> vector<1x16xf32>
    %62 = arith.mulf %54, %61 : vector<1x16xf32>
    %63 = arith.mulf %56, %61 : vector<1x16xf32>
    %64 = arith.mulf %58, %61 : vector<1x16xf32>
    %65 = arith.maximumf %34, %42 : vector<8x1xf32>
    %66 = arith.maximumf %65, %50 : vector<8x1xf32>
    %67 = arith.subf %34, %66 : vector<8x1xf32>
    %68 = math.exp %67 : vector<8x1xf32>
    %69 = arith.subf %42, %66 : vector<8x1xf32>
    %70 = math.exp %69 : vector<8x1xf32>
    %71 = arith.subf %50, %66 : vector<8x1xf32>
    %72 = math.exp %71 : vector<8x1xf32>
    %73 = arith.addf %68, %70 : vector<8x1xf32>
    %74 = arith.addf %73, %72 : vector<8x1xf32>
    %75 = tpu.reciprocal %74 {approx = true} : vector<8x1xf32> -> vector<8x1xf32>
    %76 = arith.mulf %68, %75 : vector<8x1xf32>
    %77 = arith.mulf %70, %75 : vector<8x1xf32>
    %78 = arith.mulf %72, %75 : vector<8x1xf32>
    %79 = vector.extract_strided_slice %17 {offsets = [0, 0], sizes = [8, 1], strides = [1, 1]} : vector<24x1xf32> to vector<8x1xf32>
    %80 = vector.broadcast %62 : vector<1x16xf32> to vector<8x16xf32>
    %81 = vector.broadcast %79 : vector<8x1xf32> to vector<8x16xf32>
    %82 = arith.mulf %80, %81 : vector<8x16xf32>
    %83 = vector.extract_strided_slice %24 {offsets = [0, 0], sizes = [8, 64], strides = [1, 1]} : vector<24x64xf32> to vector<8x64xf32>
    %84 = vector.broadcast %76 : vector<8x1xf32> to vector<8x64xf32>
    %85 = arith.mulf %84, %83 : vector<8x64xf32>
    %86 = vector.extract_strided_slice %17 {offsets = [8, 0], sizes = [8, 1], strides = [1, 1]} : vector<24x1xf32> to vector<8x1xf32>
    %87 = vector.broadcast %63 : vector<1x16xf32> to vector<8x16xf32>
    %88 = vector.broadcast %86 : vector<8x1xf32> to vector<8x16xf32>
    %89 = arith.mulf %87, %88 : vector<8x16xf32>
    %90 = arith.addf %82, %89 : vector<8x16xf32>
    %91 = vector.extract_strided_slice %24 {offsets = [8, 0], sizes = [8, 64], strides = [1, 1]} : vector<24x64xf32> to vector<8x64xf32>
    %92 = vector.broadcast %77 : vector<8x1xf32> to vector<8x64xf32>
    %93 = arith.mulf %92, %91 : vector<8x64xf32>
    %94 = arith.addf %85, %93 : vector<8x64xf32>
    %95 = vector.extract_strided_slice %17 {offsets = [16, 0], sizes = [8, 1], strides = [1, 1]} : vector<24x1xf32> to vector<8x1xf32>
    %96 = vector.broadcast %64 : vector<1x16xf32> to vector<8x16xf32>
    %97 = vector.broadcast %95 : vector<8x1xf32> to vector<8x16xf32>
    %98 = arith.mulf %96, %97 : vector<8x16xf32>
    %99 = arith.addf %90, %98 : vector<8x16xf32>
    %100 = vector.extract_strided_slice %24 {offsets = [16, 0], sizes = [8, 64], strides = [1, 1]} : vector<24x64xf32> to vector<8x64xf32>
    %101 = vector.broadcast %78 : vector<8x1xf32> to vector<8x64xf32>
    %102 = arith.mulf %101, %100 : vector<8x64xf32>
    %103 = arith.addf %94, %102 : vector<8x64xf32>
    %104 = vector.extract_strided_slice %15 {offsets = [8, 0], sizes = [8, 16], strides = [1, 1]} : vector<24x16xf32> to vector<8x16xf32>
    %105 = vector.extract_strided_slice %22 {offsets = [8, 0], sizes = [8, 16], strides = [1, 1]} : vector<24x16xf32> to vector<8x16xf32>
    %106 = vector.extract_strided_slice %16 {offsets = [0, 0], sizes = [8, 16], strides = [1, 1]} : vector<24x16xf32> to vector<8x16xf32>
    %107 = arith.mulf %104, %106 : vector<8x16xf32>
    %cst_20 = arith.constant dense<0.000000e+00> : vector<16xf32>
    %108 = vector.multi_reduction <add>, %107, %cst_20 [0] : vector<8x16xf32> to vector<16xf32>
    %109 = vector.shape_cast %108 : vector<16xf32> to vector<1x16xf32>
    %110 = vector.extract_strided_slice %23 {offsets = [0, 0], sizes = [8, 16], strides = [1, 1]} : vector<24x16xf32> to vector<8x16xf32>
    %111 = arith.mulf %105, %110 : vector<8x16xf32>
    %cst_21 = arith.constant dense<0.000000e+00> : vector<8xf32>
    %112 = vector.multi_reduction <add>, %111, %cst_21 [1] : vector<8x16xf32> to vector<8xf32>
    %113 = vector.shape_cast %112 : vector<8xf32> to vector<8x1xf32>
    %114 = vector.extract_strided_slice %16 {offsets = [8, 0], sizes = [8, 16], strides = [1, 1]} : vector<24x16xf32> to vector<8x16xf32>
    %115 = arith.mulf %104, %114 : vector<8x16xf32>
    %cst_22 = arith.constant dense<0.000000e+00> : vector<16xf32>
    %116 = vector.multi_reduction <add>, %115, %cst_22 [0] : vector<8x16xf32> to vector<16xf32>
    %117 = vector.shape_cast %116 : vector<16xf32> to vector<1x16xf32>
    %118 = vector.extract_strided_slice %23 {offsets = [8, 0], sizes = [8, 16], strides = [1, 1]} : vector<24x16xf32> to vector<8x16xf32>
    %119 = arith.mulf %105, %118 : vector<8x16xf32>
    %cst_23 = arith.constant dense<0.000000e+00> : vector<8xf32>
    %120 = vector.multi_reduction <add>, %119, %cst_23 [1] : vector<8x16xf32> to vector<8xf32>
    %121 = vector.shape_cast %120 : vector<8xf32> to vector<8x1xf32>
    %122 = vector.extract_strided_slice %16 {offsets = [16, 0], sizes = [8, 16], strides = [1, 1]} : vector<24x16xf32> to vector<8x16xf32>
    %123 = arith.mulf %104, %122 : vector<8x16xf32>
    %cst_24 = arith.constant dense<0.000000e+00> : vector<16xf32>
    %124 = vector.multi_reduction <add>, %123, %cst_24 [0] : vector<8x16xf32> to vector<16xf32>
    %125 = vector.shape_cast %124 : vector<16xf32> to vector<1x16xf32>
    %126 = vector.extract_strided_slice %23 {offsets = [16, 0], sizes = [8, 16], strides = [1, 1]} : vector<24x16xf32> to vector<8x16xf32>
    %127 = arith.mulf %105, %126 : vector<8x16xf32>
    %cst_25 = arith.constant dense<0.000000e+00> : vector<8xf32>
    %128 = vector.multi_reduction <add>, %127, %cst_25 [1] : vector<8x16xf32> to vector<8xf32>
    %129 = vector.shape_cast %128 : vector<8xf32> to vector<8x1xf32>
    %130 = arith.maximumf %109, %117 : vector<1x16xf32>
    %131 = arith.maximumf %130, %125 : vector<1x16xf32>
    %132 = arith.subf %109, %131 : vector<1x16xf32>
    %133 = math.exp %132 : vector<1x16xf32>
    %134 = arith.subf %117, %131 : vector<1x16xf32>
    %135 = math.exp %134 : vector<1x16xf32>
    %136 = arith.subf %125, %131 : vector<1x16xf32>
    %137 = math.exp %136 : vector<1x16xf32>
    %138 = arith.addf %133, %135 : vector<1x16xf32>
    %139 = arith.addf %138, %137 : vector<1x16xf32>
    %140 = tpu.reciprocal %139 {approx = true} : vector<1x16xf32> -> vector<1x16xf32>
    %141 = arith.mulf %133, %140 : vector<1x16xf32>
    %142 = arith.mulf %135, %140 : vector<1x16xf32>
    %143 = arith.mulf %137, %140 : vector<1x16xf32>
    %144 = arith.maximumf %113, %121 : vector<8x1xf32>
    %145 = arith.maximumf %144, %129 : vector<8x1xf32>
    %146 = arith.subf %113, %145 : vector<8x1xf32>
    %147 = math.exp %146 : vector<8x1xf32>
    %148 = arith.subf %121, %145 : vector<8x1xf32>
    %149 = math.exp %148 : vector<8x1xf32>
    %150 = arith.subf %129, %145 : vector<8x1xf32>
    %151 = math.exp %150 : vector<8x1xf32>
    %152 = arith.addf %147, %149 : vector<8x1xf32>
    %153 = arith.addf %152, %151 : vector<8x1xf32>
    %154 = tpu.reciprocal %153 {approx = true} : vector<8x1xf32> -> vector<8x1xf32>
    %155 = arith.mulf %147, %154 : vector<8x1xf32>
    %156 = arith.mulf %149, %154 : vector<8x1xf32>
    %157 = arith.mulf %151, %154 : vector<8x1xf32>
    %158 = vector.extract_strided_slice %17 {offsets = [0, 0], sizes = [8, 1], strides = [1, 1]} : vector<24x1xf32> to vector<8x1xf32>
    %159 = vector.broadcast %141 : vector<1x16xf32> to vector<8x16xf32>
    %160 = vector.broadcast %158 : vector<8x1xf32> to vector<8x16xf32>
    %161 = arith.mulf %159, %160 : vector<8x16xf32>
    %162 = vector.extract_strided_slice %24 {offsets = [0, 0], sizes = [8, 64], strides = [1, 1]} : vector<24x64xf32> to vector<8x64xf32>
    %163 = vector.broadcast %155 : vector<8x1xf32> to vector<8x64xf32>
    %164 = arith.mulf %163, %162 : vector<8x64xf32>
    %165 = vector.extract_strided_slice %17 {offsets = [8, 0], sizes = [8, 1], strides = [1, 1]} : vector<24x1xf32> to vector<8x1xf32>
    %166 = vector.broadcast %142 : vector<1x16xf32> to vector<8x16xf32>
    %167 = vector.broadcast %165 : vector<8x1xf32> to vector<8x16xf32>
    %168 = arith.mulf %166, %167 : vector<8x16xf32>
    %169 = arith.addf %161, %168 : vector<8x16xf32>
    %170 = vector.extract_strided_slice %24 {offsets = [8, 0], sizes = [8, 64], strides = [1, 1]} : vector<24x64xf32> to vector<8x64xf32>
    %171 = vector.broadcast %156 : vector<8x1xf32> to vector<8x64xf32>
    %172 = arith.mulf %171, %170 : vector<8x64xf32>
    %173 = arith.addf %164, %172 : vector<8x64xf32>
    %174 = vector.extract_strided_slice %17 {offsets = [16, 0], sizes = [8, 1], strides = [1, 1]} : vector<24x1xf32> to vector<8x1xf32>
    %175 = vector.broadcast %143 : vector<1x16xf32> to vector<8x16xf32>
    %176 = vector.broadcast %174 : vector<8x1xf32> to vector<8x16xf32>
    %177 = arith.mulf %175, %176 : vector<8x16xf32>
    %178 = arith.addf %169, %177 : vector<8x16xf32>
    %179 = vector.extract_strided_slice %24 {offsets = [16, 0], sizes = [8, 64], strides = [1, 1]} : vector<24x64xf32> to vector<8x64xf32>
    %180 = vector.broadcast %157 : vector<8x1xf32> to vector<8x64xf32>
    %181 = arith.mulf %180, %179 : vector<8x64xf32>
    %182 = arith.addf %173, %181 : vector<8x64xf32>
    %183 = vector.extract_strided_slice %15 {offsets = [16, 0], sizes = [8, 16], strides = [1, 1]} : vector<24x16xf32> to vector<8x16xf32>
    %184 = vector.extract_strided_slice %22 {offsets = [16, 0], sizes = [8, 16], strides = [1, 1]} : vector<24x16xf32> to vector<8x16xf32>
    %185 = vector.extract_strided_slice %16 {offsets = [0, 0], sizes = [8, 16], strides = [1, 1]} : vector<24x16xf32> to vector<8x16xf32>
    %186 = arith.mulf %183, %185 : vector<8x16xf32>
    %cst_26 = arith.constant dense<0.000000e+00> : vector<16xf32>
    %187 = vector.multi_reduction <add>, %186, %cst_26 [0] : vector<8x16xf32> to vector<16xf32>
    %188 = vector.shape_cast %187 : vector<16xf32> to vector<1x16xf32>
    %189 = vector.extract_strided_slice %23 {offsets = [0, 0], sizes = [8, 16], strides = [1, 1]} : vector<24x16xf32> to vector<8x16xf32>
    %190 = arith.mulf %184, %189 : vector<8x16xf32>
    %cst_27 = arith.constant dense<0.000000e+00> : vector<8xf32>
    %191 = vector.multi_reduction <add>, %190, %cst_27 [1] : vector<8x16xf32> to vector<8xf32>
    %192 = vector.shape_cast %191 : vector<8xf32> to vector<8x1xf32>
    %193 = vector.extract_strided_slice %16 {offsets = [8, 0], sizes = [8, 16], strides = [1, 1]} : vector<24x16xf32> to vector<8x16xf32>
    %194 = arith.mulf %183, %193 : vector<8x16xf32>
    %cst_28 = arith.constant dense<0.000000e+00> : vector<16xf32>
    %195 = vector.multi_reduction <add>, %194, %cst_28 [0] : vector<8x16xf32> to vector<16xf32>
    %196 = vector.shape_cast %195 : vector<16xf32> to vector<1x16xf32>
    %197 = vector.extract_strided_slice %23 {offsets = [8, 0], sizes = [8, 16], strides = [1, 1]} : vector<24x16xf32> to vector<8x16xf32>
    %198 = arith.mulf %184, %197 : vector<8x16xf32>
    %cst_29 = arith.constant dense<0.000000e+00> : vector<8xf32>
    %199 = vector.multi_reduction <add>, %198, %cst_29 [1] : vector<8x16xf32> to vector<8xf32>
    %200 = vector.shape_cast %199 : vector<8xf32> to vector<8x1xf32>
    %201 = vector.extract_strided_slice %16 {offsets = [16, 0], sizes = [8, 16], strides = [1, 1]} : vector<24x16xf32> to vector<8x16xf32>
    %202 = arith.mulf %183, %201 : vector<8x16xf32>
    %cst_30 = arith.constant dense<0.000000e+00> : vector<16xf32>
    %203 = vector.multi_reduction <add>, %202, %cst_30 [0] : vector<8x16xf32> to vector<16xf32>
    %204 = vector.shape_cast %203 : vector<16xf32> to vector<1x16xf32>
    %205 = vector.extract_strided_slice %23 {offsets = [16, 0], sizes = [8, 16], strides = [1, 1]} : vector<24x16xf32> to vector<8x16xf32>
    %206 = arith.mulf %184, %205 : vector<8x16xf32>
    %cst_31 = arith.constant dense<0.000000e+00> : vector<8xf32>
    %207 = vector.multi_reduction <add>, %206, %cst_31 [1] : vector<8x16xf32> to vector<8xf32>
    %208 = vector.shape_cast %207 : vector<8xf32> to vector<8x1xf32>
    %209 = arith.maximumf %188, %196 : vector<1x16xf32>
    %210 = arith.maximumf %209, %204 : vector<1x16xf32>
    %211 = arith.subf %188, %210 : vector<1x16xf32>
    %212 = math.exp %211 : vector<1x16xf32>
    %213 = arith.subf %196, %210 : vector<1x16xf32>
    %214 = math.exp %213 : vector<1x16xf32>
    %215 = arith.subf %204, %210 : vector<1x16xf32>
    %216 = math.exp %215 : vector<1x16xf32>
    %217 = arith.addf %212, %214 : vector<1x16xf32>
    %218 = arith.addf %217, %216 : vector<1x16xf32>
    %219 = tpu.reciprocal %218 {approx = true} : vector<1x16xf32> -> vector<1x16xf32>
    %220 = arith.mulf %212, %219 : vector<1x16xf32>
    %221 = arith.mulf %214, %219 : vector<1x16xf32>
    %222 = arith.mulf %216, %219 : vector<1x16xf32>
    %223 = arith.maximumf %192, %200 : vector<8x1xf32>
    %224 = arith.maximumf %223, %208 : vector<8x1xf32>
    %225 = arith.subf %192, %224 : vector<8x1xf32>
    %226 = math.exp %225 : vector<8x1xf32>
    %227 = arith.subf %200, %224 : vector<8x1xf32>
    %228 = math.exp %227 : vector<8x1xf32>
    %229 = arith.subf %208, %224 : vector<8x1xf32>
    %230 = math.exp %229 : vector<8x1xf32>
    %231 = arith.addf %226, %228 : vector<8x1xf32>
    %232 = arith.addf %231, %230 : vector<8x1xf32>
    %233 = tpu.reciprocal %232 {approx = true} : vector<8x1xf32> -> vector<8x1xf32>
    %234 = arith.mulf %226, %233 : vector<8x1xf32>
    %235 = arith.mulf %228, %233 : vector<8x1xf32>
    %236 = arith.mulf %230, %233 : vector<8x1xf32>
    %237 = vector.extract_strided_slice %17 {offsets = [0, 0], sizes = [8, 1], strides = [1, 1]} : vector<24x1xf32> to vector<8x1xf32>
    %238 = vector.broadcast %220 : vector<1x16xf32> to vector<8x16xf32>
    %239 = vector.broadcast %237 : vector<8x1xf32> to vector<8x16xf32>
    %240 = arith.mulf %238, %239 : vector<8x16xf32>
    %241 = vector.extract_strided_slice %24 {offsets = [0, 0], sizes = [8, 64], strides = [1, 1]} : vector<24x64xf32> to vector<8x64xf32>
    %242 = vector.broadcast %234 : vector<8x1xf32> to vector<8x64xf32>
    %243 = arith.mulf %242, %241 : vector<8x64xf32>
    %244 = vector.extract_strided_slice %17 {offsets = [8, 0], sizes = [8, 1], strides = [1, 1]} : vector<24x1xf32> to vector<8x1xf32>
    %245 = vector.broadcast %221 : vector<1x16xf32> to vector<8x16xf32>
    %246 = vector.broadcast %244 : vector<8x1xf32> to vector<8x16xf32>
    %247 = arith.mulf %245, %246 : vector<8x16xf32>
    %248 = arith.addf %240, %247 : vector<8x16xf32>
    %249 = vector.extract_strided_slice %24 {offsets = [8, 0], sizes = [8, 64], strides = [1, 1]} : vector<24x64xf32> to vector<8x64xf32>
    %250 = vector.broadcast %235 : vector<8x1xf32> to vector<8x64xf32>
    %251 = arith.mulf %250, %249 : vector<8x64xf32>
    %252 = arith.addf %243, %251 : vector<8x64xf32>
    %253 = vector.extract_strided_slice %17 {offsets = [16, 0], sizes = [8, 1], strides = [1, 1]} : vector<24x1xf32> to vector<8x1xf32>
    %254 = vector.broadcast %222 : vector<1x16xf32> to vector<8x16xf32>
    %255 = vector.broadcast %253 : vector<8x1xf32> to vector<8x16xf32>
    %256 = arith.mulf %254, %255 : vector<8x16xf32>
    %257 = arith.addf %248, %256 : vector<8x16xf32>
    %258 = vector.extract_strided_slice %24 {offsets = [16, 0], sizes = [8, 64], strides = [1, 1]} : vector<24x64xf32> to vector<8x64xf32>
    %259 = vector.broadcast %236 : vector<8x1xf32> to vector<8x64xf32>
    %260 = arith.mulf %259, %258 : vector<8x64xf32>
    %261 = arith.addf %252, %260 : vector<8x64xf32>
    %262 = tpu.concatenate %62, %63, %64, %141, %142, %143, %220, %221, %222 in 1 : vector<1x16xf32>, vector<1x16xf32>, vector<1x16xf32>, vector<1x16xf32>, vector<1x16xf32>, vector<1x16xf32>, vector<1x16xf32>, vector<1x16xf32>, vector<1x16xf32> -> vector<1x144xf32>
    %c0_32 = arith.constant 0 : index
    %c0_33 = arith.constant 0 : index
    %c0_34 = arith.constant 0 : index
    %263 = vector.load %arg9[%c0_32, %c0_33, %c0_34] : memref<1x1x144xf32, #tpu.memory_space<vmem>>, vector<1x1x144xf32>
    %264 = vector.shape_cast %263 : vector<1x1x144xf32> to vector<1x144xf32>
    %265 = vector.shape_cast %262 : vector<1x144xf32> to vector<1x1x144xf32>
    tpu.vector_store %arg9[%c0_32, %c0_33, %c0_34], %265 {strides = array<i32>} : memref<1x1x144xf32, #tpu.memory_space<vmem>>, vector<1x1x144xf32>,
    %266 = tpu.concatenate %76, %77, %78, %155, %156, %157, %234, %235, %236 in 1 : vector<8x1xf32>, vector<8x1xf32>, vector<8x1xf32>, vector<8x1xf32>, vector<8x1xf32>, vector<8x1xf32>, vector<8x1xf32>, vector<8x1xf32>, vector<8x1xf32> -> vector<8x9xf32>
    %c0_35 = arith.constant 0 : index
    %c0_36 = arith.constant 0 : index
    %c0_37 = arith.constant 0 : index
    %267 = vector.load %arg10[%c0_35, %c0_36, %c0_37] : memref<1x8x9xf32, #tpu.memory_space<vmem>>, vector<1x8x9xf32>
    %268 = vector.shape_cast %267 : vector<1x8x9xf32> to vector<8x9xf32>
    %269 = vector.shape_cast %266 : vector<8x9xf32> to vector<1x8x9xf32>
    tpu.vector_store %arg10[%c0_35, %c0_36, %c0_37], %269 {strides = array<i32>} : memref<1x8x9xf32, #tpu.memory_space<vmem>>, vector<1x8x9xf32>,
    %270 = tpu.concatenate %99, %178, %257 in 0 : vector<8x16xf32>, vector<8x16xf32>, vector<8x16xf32> -> vector<24x16xf32>
    %271 = tpu.concatenate %103, %182, %261 in 0 : vector<8x64xf32>, vector<8x64xf32>, vector<8x64xf32> -> vector<24x64xf32>
    %272 = arith.truncf %270 : vector<24x16xf32> to vector<24x16xbf16>
    %c0_38 = arith.constant 0 : index
    %c0_39 = arith.constant 0 : index
    %273 = vector.load %arg6[%c0_38, %c0_39] : memref<16x64xbf16, #tpu.memory_space<vmem>>, vector<16x64xbf16>
    %cst_40 = arith.constant dense<0.000000e+00> : vector<24x64xf32>
    %274 = tpu.matmul %272, %273, %cst_40 {dimension_numbers = #tpu.dot_dimension_numbers<[1], [0], [0], [1], [0, 0, 1, 1], [], []>} : vector<24x16xbf16>, vector<16x64xbf16>, vector<24x64xf32> -> vector<24x64xf32>
    %c0_41 = arith.constant 0 : index
    %c0_42 = arith.constant 0 : index
    %275 = vector.load %arg7[%c0_41, %c0_42] : memref<1x64xf32, #tpu.memory_space<vmem>>, vector<1x64xf32>
    %276 = vector.broadcast %275 : vector<1x64xf32> to vector<24x64xf32>
    %277 = arith.addf %274, %276 : vector<24x64xf32>
    %278 = arith.addf %277, %271 : vector<24x64xf32>
    %c0_43 = arith.constant 0 : index
    %c0_44 = arith.constant 0 : index
    %c0_45 = arith.constant 0 : index
    %279 = vector.load %arg8[%c0_43, %c0_44, %c0_45] : memref<1x24x64xf32, #tpu.memory_space<vmem>>, vector<1x24x64xf32>
    %280 = vector.shape_cast %279 : vector<1x24x64xf32> to vector<24x64xf32>
    %281 = vector.shape_cast %278 : vector<24x64xf32> to vector<1x24x64xf32>
    tpu.vector_store %arg8[%c0_43, %c0_44, %c0_45], %281 {strides = array<i32>} : memref<1x24x64xf32, #tpu.memory_space<vmem>>, vector<1x24x64xf32>,
    return
  }
  func.func @transform_0(%arg0: i32) -> (i32, i32, i32) {
    %c0_i32 = arith.constant 0 : i32
    %c0_i32_0 = arith.constant 0 : i32
    %c0_i32_1 = arith.constant 0 : i32
    return %arg0, %c0_i32, %c0_i32_0 : i32, i32, i32
  }
  func.func @transform_1(%arg0: i32) -> (i32, i32) {
    %c0_i32 = arith.constant 0 : i32
    %c0_i32_0 = arith.constant 0 : i32
    %c0_i32_1 = arith.constant 0 : i32
    return %c0_i32, %c0_i32_0 : i32, i32
  }
  func.func @transform_2(%arg0: i32) -> (i32, i32) {
    %c0_i32 = arith.constant 0 : i32
    %c0_i32_0 = arith.constant 0 : i32
    %c0_i32_1 = arith.constant 0 : i32
    return %c0_i32, %c0_i32_0 : i32, i32
  }
  func.func @transform_3(%arg0: i32) -> (i32, i32) {
    %c0_i32 = arith.constant 0 : i32
    %c0_i32_0 = arith.constant 0 : i32
    %c0_i32_1 = arith.constant 0 : i32
    return %c0_i32, %c0_i32_0 : i32, i32
  }
  func.func @transform_4(%arg0: i32) -> (i32, i32) {
    %c0_i32 = arith.constant 0 : i32
    %c0_i32_0 = arith.constant 0 : i32
    %c0_i32_1 = arith.constant 0 : i32
    return %c0_i32, %c0_i32_0 : i32, i32
  }
  func.func @transform_5(%arg0: i32) -> (i32, i32) {
    %c0_i32 = arith.constant 0 : i32
    %c0_i32_0 = arith.constant 0 : i32
    %c0_i32_1 = arith.constant 0 : i32
    return %c0_i32, %c0_i32_0 : i32, i32
  }
  func.func @transform_6(%arg0: i32) -> (i32, i32) {
    %c0_i32 = arith.constant 0 : i32
    %c0_i32_0 = arith.constant 0 : i32
    %c0_i32_1 = arith.constant 0 : i32
    return %c0_i32, %c0_i32_0 : i32, i32
  }
  func.func @transform_7(%arg0: i32) -> (i32, i32, i32) {
    %c0_i32 = arith.constant 0 : i32
    %c0_i32_0 = arith.constant 0 : i32
    %c0_i32_1 = arith.constant 0 : i32
    return %arg0, %c0_i32, %c0_i32_0 : i32, i32, i32
  }
  func.func @transform_8(%arg0: i32) -> (i32, i32, i32) {
    %c0_i32 = arith.constant 0 : i32
    %c0_i32_0 = arith.constant 0 : i32
    %c0_i32_1 = arith.constant 0 : i32
    return %arg0, %c0_i32, %c0_i32_0 : i32, i32, i32
  }
  func.func @transform_9(%arg0: i32) -> (i32, i32, i32) {
    %c0_i32 = arith.constant 0 : i32
    %c0_i32_0 = arith.constant 0 : i32
    %c0_i32_1 = arith.constant 0 : i32
    return %arg0, %c0_i32, %c0_i32_0 : i32, i32, i32
  }
}

</mosaic_0001>

<llo_original>
// kernel: lgconv_forward.1
$region0: #{lgconv_forward.1}
  #allocation0 [shape = 'u32[]', space=smem, size = 0x4, offset = 0x4, fixed_abs, tag = 'smem constant byte address 0x4 - core index']
  #allocation1 [shape = 'u32[144,128]{1,0:T(1,128)}', space=vmem, size = 0x12000, scoped, tag = 'internal scratch']
  %s0 = inlined_call_operand.vmem [shape: bf16[2,24,64], index: 0, kind: input, shape index: {}]
  %s1 = inlined_call_operand.vmem [shape: bf16[64,32], index: 1, kind: input, shape index: {}]
  %s2 = inlined_call_operand.vmem [shape: f32[1,32], index: 2, kind: input, shape index: {}]
  %s3 = inlined_call_operand.vmem [shape: bf16[33,16], index: 3, kind: input, shape index: {}]
  %s4 = inlined_call_operand.vmem [shape: bf16[96,16], index: 4, kind: input, shape index: {}]
  %s5 = inlined_call_operand.vmem [shape: bf16[16,64], index: 5, kind: input, shape index: {}]
  %s6 = inlined_call_operand.vmem [shape: f32[1,64], index: 6, kind: input, shape index: {}]
  %s7 = inlined_call_operand.vmem [shape: f32[2,24,64], index: 7, kind: output, shape index: {0}]
  %s8 = inlined_call_operand.vmem [shape: f32[2,1,144], index: 8, kind: output, shape index: {1}]
  %s9 = inlined_call_operand.vmem [shape: f32[2,8,9], index: 9, kind: output, shape index: {2}]
  %10 = xla_tuple %s7, %s8, %s9
  %s11 = sld [smem:[#allocation0]]
  $region77: #{lgconv_forward.1} parent=0
    _
  %s13 = ssub.s32 1, %s11
  %s14 = scalar_select 0, %s13, %s11
  loop: start=0, step=1, limit=4
  $region2: #{lgconv_forward.1} parent=0 // loop_pre_header
    _
  $region3: #{lgconv_forward.1} parent=0 // loop_header
    %s16 = sphi 0, %s20
    %p17 = scmp.ge.s32.totalorder %s16, 4
    %s26 = sphi 0, %s28
    %s29 = sphi 0, %s26
    %s30 = sphi 0, %s29
    %s46 = sphi 0, %s30
    %s50 = sphi 0, %s50
    %s52 = sphi 0, %s50
    %s53 = sphi 0, %s52
    %s67 = sphi 0, %s53
    %s71 = sphi 0, %s71
    %s73 = sphi 0, %s71
    %s74 = sphi 0, %s73
    %s88 = sphi 0, %s74
    %s92 = sphi 0, %s92
    %s94 = sphi 0, %s92
    %s95 = sphi 0, %s94
    %s109 = sphi 0, %s95
    %s113 = sphi 0, %s113
    %s115 = sphi 0, %s113
    %s116 = sphi 0, %s115
    %s130 = sphi 0, %s116
    %s134 = sphi 0, %s134
    %s136 = sphi 0, %s134
    %s137 = sphi 0, %s136
    %s151 = sphi 0, %s137
    %s155 = sphi 0, %s155
    %s157 = sphi 0, %s155
    %s158 = sphi 0, %s157
    %s172 = sphi 0, %s158
    %s178 = sphi 0, %s180
    %s181 = sphi 0, %s178
    %s182 = sphi 0, %s181
    %s198 = sphi 0, %s182
    %s204 = sphi 0, %s206
    %s207 = sphi 0, %s204
    %s208 = sphi 0, %s207
    %s224 = sphi 0, %s208
    %s230 = sphi 0, %s232
    %s233 = sphi 0, %s230
    %s234 = sphi 0, %s233
    %s250 = sphi 0, %s234
  $region4: #{lgconv_forward.1} parent=0 // loop_header_branch
    %19 = sbr.rel (%p17) target = $region8
  $region5: #{lgconv_forward.1} parent=0 // loop_body
    %s21 = ssub.s32 %s16, 1
    %s22 = ssub.s32 %s16, 2
    %s23 = sadd.s32 %s16, 1
    %s24 = ssub.s32 %s16, %s23
    %p25 = scmp.eq.s32.totalorder %s24, 0
    %s27 = sadd.s32 %s26, 1
    %s28 = scalar_select %p25, %s26, %s27
    %p31 = pneg %p25
    %p32 = scmp.eq.s32.totalorder %s16, 1
    %p33 = por %p31, %p32
    %p34 = scmp.ne.s32.totalorder %s26, %s29
    %p35 = scmp.eq.s32.totalorder %s16, 0
    %p36 = por %p34, %p35
    %p37 = scmp.ne.s32.totalorder %s26, %s29
    %p38 = scmp.eq.s32.totalorder %s21, 1
    %p39 = por %p37, %p38
    %p40 = scmp.ne.s32.totalorder %s29, %s30
    %p41 = scmp.eq.s32.totalorder %s21, 0
    %p42 = por %p40, %p41
    %p43 = scmp.ne.s32.totalorder %s29, %s30
    %p44 = scmp.eq.s32.totalorder %s22, 1
    %p45 = por %p43, %p44
    %p47 = scmp.ne.s32.totalorder %s30, %s46
    %p48 = scmp.eq.s32.totalorder %s22, 0
    %p49 = por %p47, %p48
    %s51 = sadd.s32 %s50, 1
    %p54 = scmp.eq.s32.totalorder %s16, 1
    %p55 = scmp.ne.s32.totalorder %s50, %s52
    %p56 = scmp.eq.s32.totalorder %s16, 0
    %p57 = por %p55, %p56
    %p58 = scmp.ne.s32.totalorder %s50, %s52
    %p59 = scmp.eq.s32.totalorder %s21, 1
    %p60 = por %p58, %p59
    %p61 = scmp.ne.s32.totalorder %s52, %s53
    %p62 = scmp.eq.s32.totalorder %s21, 0
    %p63 = por %p61, %p62
    %p64 = scmp.ne.s32.totalorder %s52, %s53
    %p65 = scmp.eq.s32.totalorder %s22, 1
    %p66 = por %p64, %p65
    %p68 = scmp.ne.s32.totalorder %s53, %s67
    %p69 = scmp.eq.s32.totalorder %s22, 0
    %p70 = por %p68, %p69
    %s72 = sadd.s32 %s71, 1
    %p75 = scmp.eq.s32.totalorder %s16, 1
    %p76 = scmp.ne.s32.totalorder %s71, %s73
    %p77 = scmp.eq.s32.totalorder %s16, 0
    %p78 = por %p76, %p77
    %p79 = scmp.ne.s32.totalorder %s71, %s73
    %p80 = scmp.eq.s32.totalorder %s21, 1
    %p81 = por %p79, %p80
    %p82 = scmp.ne.s32.totalorder %s73, %s74
    %p83 = scmp.eq.s32.totalorder %s21, 0
    %p84 = por %p82, %p83
    %p85 = scmp.ne.s32.totalorder %s73, %s74
    %p86 = scmp.eq.s32.totalorder %s22, 1
    %p87 = por %p85, %p86
    %p89 = scmp.ne.s32.totalorder %s74, %s88
    %p90 = scmp.eq.s32.totalorder %s22, 0
    %p91 = por %p89, %p90
    %s93 = sadd.s32 %s92, 1
    %p96 = scmp.eq.s32.totalorder %s16, 1
    %p97 = scmp.ne.s32.totalorder %s92, %s94
    %p98 = scmp.eq.s32.totalorder %s16, 0
    %p99 = por %p97, %p98
    %p100 = scmp.ne.s32.totalorder %s92, %s94
    %p101 = scmp.eq.s32.totalorder %s21, 1
    %p102 = por %p100, %p101
    %p103 = scmp.ne.s32.totalorder %s94, %s95
    %p104 = scmp.eq.s32.totalorder %s21, 0
    %p105 = por %p103, %p104
    %p106 = scmp.ne.s32.totalorder %s94, %s95
    %p107 = scmp.eq.s32.totalorder %s22, 1
    %p108 = por %p106, %p107
    %p110 = scmp.ne.s32.totalorder %s95, %s109
    %p111 = scmp.eq.s32.totalorder %s22, 0
    %p112 = por %p110, %p111
    %s114 = sadd.s32 %s113, 1
    %p117 = scmp.eq.s32.totalorder %s16, 1
    %p118 = scmp.ne.s32.totalorder %s113, %s115
    %p119 = scmp.eq.s32.totalorder %s16, 0
    %p120 = por %p118, %p119
    %p121 = scmp.ne.s32.totalorder %s113, %s115
    %p122 = scmp.eq.s32.totalorder %s21, 1
    %p123 = por %p121, %p122
    %p124 = scmp.ne.s32.totalorder %s115, %s116
    %p125 = scmp.eq.s32.totalorder %s21, 0
    %p126 = por %p124, %p125
    %p127 = scmp.ne.s32.totalorder %s115, %s116
    %p128 = scmp.eq.s32.totalorder %s22, 1
    %p129 = por %p127, %p128
    %p131 = scmp.ne.s32.totalorder %s116, %s130
    %p132 = scmp.eq.s32.totalorder %s22, 0
    %p133 = por %p131, %p132
    %s135 = sadd.s32 %s134, 1
    %p138 = scmp.eq.s32.totalorder %s16, 1
    %p139 = scmp.ne.s32.totalorder %s134, %s136
    %p140 = scmp.eq.s32.totalorder %s16, 0
    %p141 = por %p139, %p140
    %p142 = scmp.ne.s32.totalorder %s134, %s136
    %p143 = scmp.eq.s32.totalorder %s21, 1
    %p144 = por %p142, %p143
    %p145 = scmp.ne.s32.totalorder %s136, %s137
    %p146 = scmp.eq.s32.totalorder %s21, 0
    %p147 = por %p145, %p146
    %p148 = scmp.ne.s32.totalorder %s136, %s137
    %p149 = scmp.eq.s32.totalorder %s22, 1
    %p150 = por %p148, %p149
    %p152 = scmp.ne.s32.totalorder %s137, %s151
    %p153 = scmp.eq.s32.totalorder %s22, 0
    %p154 = por %p152, %p153
    %s156 = sadd.s32 %s155, 1
    %p159 = scmp.eq.s32.totalorder %s16, 1
    %p160 = scmp.ne.s32.totalorder %s155, %s157
    %p161 = scmp.eq.s32.totalorder %s16, 0
    %p162 = por %p160, %p161
    %p163 = scmp.ne.s32.totalorder %s155, %s157
    %p164 = scmp.eq.s32.totalorder %s21, 1
    %p165 = por %p163, %p164
    %p166 = scmp.ne.s32.totalorder %s157, %s158
    %p167 = scmp.eq.s32.totalorder %s21, 0
    %p168 = por %p166, %p167
    %p169 = scmp.ne.s32.totalorder %s157, %s158
    %p170 = scmp.eq.s32.totalorder %s22, 1
    %p171 = por %p169, %p170
    %p173 = scmp.ne.s32.totalorder %s158, %s172
    %p174 = scmp.eq.s32.totalorder %s22, 0
    %p175 = por %p173, %p174
    %s176 = ssub.s32 %s16, %s23
    %p177 = scmp.eq.s32.totalorder %s176, 0
    %s179 = sadd.s32 %s178, 1
    %s180 = scalar_select %p177, %s178, %s179
    %p183 = pneg %p177
    %p184 = scmp.eq.s32.totalorder %s16, 1
    %p185 = por %p183, %p184
    %p186 = scmp.ne.s32.totalorder %s178, %s181
    %p187 = scmp.eq.s32.totalorder %s16, 0
    %p188 = por %p186, %p187
    %p189 = scmp.ne.s32.totalorder %s178, %s181
    %p190 = scmp.eq.s32.totalorder %s21, 1
    %p191 = por %p189, %p190
    %p192 = scmp.ne.s32.totalorder %s181, %s182
    %p193 = scmp.eq.s32.totalorder %s21, 0
    %p194 = por %p192, %p193
    %p195 = scmp.ne.s32.totalorder %s181, %s182
    %p196 = scmp.eq.s32.totalorder %s22, 1
    %p197 = por %p195, %p196
    %p199 = scmp.ne.s32.totalorder %s182, %s198
    %p200 = scmp.eq.s32.totalorder %s22, 0
    %p201 = por %p199, %p200
    %s202 = ssub.s32 %s16, %s23
    %p203 = scmp.eq.s32.totalorder %s202, 0
    %s205 = sadd.s32 %s204, 1
    %s206 = scalar_select %p203, %s204, %s205
    %p209 = pneg %p203
    %p210 = scmp.eq.s32.totalorder %s16, 1
    %p211 = por %p209, %p210
    %p212 = scmp.ne.s32.totalorder %s204, %s207
    %p213 = scmp.eq.s32.totalorder %s16, 0
    %p214 = por %p212, %p213
    %p215 = scmp.ne.s32.totalorder %s204, %s207
    %p216 = scmp.eq.s32.totalorder %s21, 1
    %p217 = por %p215, %p216
    %p218 = scmp.ne.s32.totalorder %s207, %s208
    %p219 = scmp.eq.s32.totalorder %s21, 0
    %p220 = por %p218, %p219
    %p221 = scmp.ne.s32.totalorder %s207, %s208
    %p222 = scmp.eq.s32.totalorder %s22, 1
    %p223 = por %p221, %p222
    %p225 = scmp.ne.s32.totalorder %s208, %s224
    %p226 = scmp.eq.s32.totalorder %s22, 0
    %p227 = por %p225, %p226
    %s228 = ssub.s32 %s16, %s23
    %p229 = scmp.eq.s32.totalorder %s228, 0
    %s231 = sadd.s32 %s230, 1
    %s232 = scalar_select %p229, %s230, %s231
    %p235 = pneg %p229
    %p236 = scmp.eq.s32.totalorder %s16, 1
    %p237 = por %p235, %p236
    %p238 = scmp.ne.s32.totalorder %s230, %s233
    %p239 = scmp.eq.s32.totalorder %s16, 0
    %p240 = por %p238, %p239
    %p241 = scmp.ne.s32.totalorder %s230, %s233
    %p242 = scmp.eq.s32.totalorder %s21, 1
    %p243 = por %p241, %p242
    %p244 = scmp.ne.s32.totalorder %s233, %s234
    %p245 = scmp.eq.s32.totalorder %s21, 0
    %p246 = por %p244, %p245
    %p247 = scmp.ne.s32.totalorder %s233, %s234
    %p248 = scmp.eq.s32.totalorder %s22, 1
    %p249 = por %p247, %p248
    %p251 = scmp.ne.s32.totalorder %s234, %s250
    %p252 = scmp.eq.s32.totalorder %s22, 0
    %p253 = por %p251, %p252
    %p254 = scmp.le.s32.totalorder 1, %s16
    %p255 = scmp.lt.s32.totalorder %s16, 3
    %p256 = pnand %p254, %p255
    %p257 = pneg %p256
    // Predicated region
    $region9: #{lgconv_forward.1} parent=5 // pred_check
      _
    $region10: #{lgconv_forward.1} parent=5 // pred_check_branch
      %259 = sbr.rel (%p256) target = $region12
    $region11: #{lgconv_forward.1} parent=5 // pred_region
      %s260 = ssub.s32 %s16, 1
      // Predicated region
      $region13: #{lgconv_forward.1} parent=11 // pred_check
        %p261 = pneg %p63
      $region14: #{lgconv_forward.1} parent=11 // pred_check_branch
        %263 = sbr.rel (%p261) target = $region16
      $region15: #{lgconv_forward.1} parent=11 // pred_region
        _
      $region16: #{lgconv_forward.1} parent=11 // pred_fallthru
        _
      // Predicated region
      $region17: #{lgconv_forward.1} parent=11 // pred_check
        %p264 = pneg %p84
      $region18: #{lgconv_forward.1} parent=11 // pred_check_branch
        %266 = sbr.rel (%p264) target = $region20
      $region19: #{lgconv_forward.1} parent=11 // pred_region
        _
      $region20: #{lgconv_forward.1} parent=11 // pred_fallthru
        _
      // Predicated region
      $region21: #{lgconv_forward.1} parent=11 // pred_check
        %p267 = pneg %p105
      $region22: #{lgconv_forward.1} parent=11 // pred_check_branch
        %269 = sbr.rel (%p267) target = $region24
      $region23: #{lgconv_forward.1} parent=11 // pred_region
        _
      $region24: #{lgconv_forward.1} parent=11 // pred_fallthru
        _
      // Predicated region
      $region25: #{lgconv_forward.1} parent=11 // pred_check
        %p270 = pneg %p126
      $region26: #{lgconv_forward.1} parent=11 // pred_check_branch
        %272 = sbr.rel (%p270) target = $region28
      $region27: #{lgconv_forward.1} parent=11 // pred_region
        _
      $region28: #{lgconv_forward.1} parent=11 // pred_fallthru
        _
      // Predicated region
      $region29: #{lgconv_forward.1} parent=11 // pred_check
        %p273 = pneg %p147
      $region30: #{lgconv_forward.1} parent=11 // pred_check_branch
        %275 = sbr.rel (%p273) target = $region32
      $region31: #{lgconv_forward.1} parent=11 // pred_region
        _
      $region32: #{lgconv_forward.1} parent=11 // pred_fallthru
        _
      // Predicated region
      $region33: #{lgconv_forward.1} parent=11 // pred_check
        %p276 = pneg %p168
      $region34: #{lgconv_forward.1} parent=11 // pred_check_branch
        %278 = sbr.rel (%p276) target = $region36
      $region35: #{lgconv_forward.1} parent=11 // pred_region
        _
      $region36: #{lgconv_forward.1} parent=11 // pred_fallthru
        _
    $region12: #{lgconv_forward.1} parent=5 // pred_fallthru
      _
    %p279 = scmp.lt.s32.totalorder %s16, 2
    // Predicated region
    $region37: #{lgconv_forward.1} parent=5 // pred_check
      %p280 = pneg %p279
    $region38: #{lgconv_forward.1} parent=5 // pred_check_branch
      %282 = sbr.rel (%p280) target = $region40
    $region39: #{lgconv_forward.1} parent=5 // pred_region
      // Predicated region
      $region41: #{lgconv_forward.1} parent=39 // pred_check
        %p283 = pneg %p36
      $region42: #{lgconv_forward.1} parent=39 // pred_check_branch
        %285 = sbr.rel (%p283) target = $region44
      $region43: #{lgconv_forward.1} parent=39 // pred_region
        %p286 = scmp.lt.s32.totalorder %s16, 1
        %s287 = scalar_select %p286, %s16, 1
        %s288 = smul.addr %s287, 3
        %s289 = smul.addr %s288, 4
        %s290 = scalar_lea.vmem %s0, %s289
      $region44: #{lgconv_forward.1} parent=39 // pred_fallthru
        _
    $region40: #{lgconv_forward.1} parent=5 // pred_fallthru
      _
    %p291 = scmp.le.s32.totalorder 1, %s16
    %p292 = scmp.lt.s32.totalorder %s16, 3
    %p293 = pnand %p291, %p292
    %p294 = pneg %p293
    // Predicated region
    $region45: #{lgconv_forward.1} parent=5 // pred_check
      _
    $region46: #{lgconv_forward.1} parent=5 // pred_check_branch
      %296 = sbr.rel (%p293) target = $region48
    $region47: #{lgconv_forward.1} parent=5 // pred_region
      %s297 = ssub.s32 %s16, 1
      %p298 = scmp.lt.s32.totalorder %s21, 1
      %s299 = scalar_select %p298, %s21, 1
      %s300 = smul.addr %s299, 3
      %s301 = smul.addr %s300, 4
      %s302 = scalar_lea.vmem %s0, %s301
      %p303 = pneg %p42
      %p304 = pneg %p39
      %p305 = pneg %p63
      %p306 = pneg %p60
      %p307 = pneg %p84
      %p308 = pneg %p81
      %p309 = pneg %p105
      %p310 = pneg %p102
      %p311 = pneg %p126
      %p312 = pneg %p123
      %p313 = pneg %p147
      %p314 = pneg %p144
      %p315 = pneg %p168
      %p316 = pneg %p165
      %p317 = pneg %p194
      %p318 = pneg %p191
      %p319 = scmp.lt.s32.totalorder %s21, 1
      %s320 = scalar_select %p319, %s21, 1
      %s321 = smul.addr %s320, 3
      %s322 = smul.addr %s321, 8
      %s323 = scalar_lea.vmem %s7, %s322
      %p324 = pneg %p220
      %p325 = pneg %p217
      %p326 = scmp.lt.s32.totalorder %s21, 1
      %s327 = scalar_select %p326, %s21, 1
      %s328 = smul.addr %s327, 2
      %s329 = scalar_lea.vmem %s8, %s328
      %p330 = pneg %p246
      %p331 = pneg %p243
      %p332 = scmp.lt.s32.totalorder %s21, 1
      %s333 = scalar_select %p332, %s21, 1
      %s334 = smul.addr %s333, 8
      %s335 = scalar_lea.vmem %s9, %s334
      %p336 = scmp.lt.s32.totalorder %s21, 1
      %s337 = scalar_select %p336, %s21, 1
      %s338 = smul.addr %s337, 3
      %s339 = smul.addr %s338, 4
      %s340 = scalar_lea.vmem %s0, %s339
      %p341 = scmp.lt.s32.totalorder %s21, 1
      %s342 = scalar_select %p341, %s21, 1
      %s343 = smul.addr %s342, 3
      %s344 = smul.addr %s343, 8
      %s345 = scalar_lea.vmem %s7, %s344
      %p346 = scmp.lt.s32.totalorder %s21, 1
      %s347 = scalar_select %p346, %s21, 1
      %s348 = smul.addr %s347, 2
      %s349 = scalar_lea.vmem %s8, %s348
      %p350 = scmp.lt.s32.totalorder %s21, 1
      %s351 = scalar_select %p350, %s21, 1
      %s352 = smul.addr %s351, 8
      %s353 = scalar_lea.vmem %s9, %s352
      %v355 = vld [vmem:[%s340] sm:$0xf]
      %v356 = vld [vmem:[%s340 + $0x4] sm:$0xf]
      %v357 = vld [vmem:[%s340 + $0x8] sm:$0xf]
      %v358 = vld [vmem:[%s1] sm:$0xf]
      %v359 = vld [vmem:[%s1 + $0x4] sm:$0xf]
      %v360 = vld [vmem:[%s1 + $0x8] sm:$0xf]
      %v361 = vld [vmem:[%s1 + $0xc] sm:$0xf]
      %v362 = vld [vmem:[%s1 + $0x10] sm:$0xf]
      %v363 = vld [vmem:[%s1 + $0x14] sm:$0xf]
      %v364 = vld [vmem:[%s1 + $0x18] sm:$0xf]
      %v365 = vld [vmem:[%s1 + $0x1c] sm:$0xf]
      %v366 = vld [vmem:[%s2] sm:$0x1]
      %v368 = vlaneseq
      %v369 = vshrl.u32 %v368, 7
      %v370 = vsub.s32 0, %v369
      %v371 = vrot.slane %v366, %v370
      %v376 = vunpack.c.l.b16 %v355
      %v377 = vunpack.c.l.b16 %v356
      %v378 = vunpack.c.l.b16 %v357
      %v379 = vpack.c.b16 %v377, %v376
      %v380 = vpack.c.b16 %v378, %v378
      %v389 = vunpack.c.l.b16 %v358
      %v390 = vunpack.c.l.b16 %v359
      %v391 = vunpack.c.l.b16 %v360
      %v392 = vunpack.c.l.b16 %v361
      %v393 = vunpack.c.l.b16 %v362
      %v394 = vunpack.c.l.b16 %v363
      %v395 = vunpack.c.l.b16 %v364
      %v396 = vunpack.c.l.b16 %v365
      %v397 = vpack.c.b16 %v390, %v389
      %v398 = vpack.c.b16 %v392, %v391
      %v399 = vpack.c.b16 %v394, %v393
      %v400 = vpack.c.b16 %v396, %v395
      %vm405 = vcmask 523264
      %v407 = vsel %vm405, %v379, 0
      %v410 = vsel %vm405, %v380, 0
      %412 = vmatprep.subr.bf16.mxu0 0
      %413 = vmatpush1.bf16.msra.mxu0 0
      %414 = vmatprep.subr.bf16.mxu0 0
      %415 = vmatpush1.bf16.msra.mxu0 0
      %416 = vmatprep.subr.bf16.mxu0 0
      %417 = vmatpush1.bf16.msra.mxu0 0
      %418 = vmatprep.subr.bf16.mxu0 0
      %419 = vmatpush1.bf16.msra.mxu0 0
      %420 = vmatprep.subr.bf16.mxu0 0
      %421 = vmatpush1.bf16.msra.mxu0 %v400
      %422 = vmatprep.subr.bf16.mxu0 0
      %423 = vmatpush1.bf16.msra.mxu0 %v399
      %424 = vmatprep.subr.bf16.mxu0 0
      %425 = vmatpush1.bf16.msra.mxu0 %v398
      %426 = vmatprep.subr.bf16.mxu0 0
      %427 = vmatpush1.bf16.msra.mxu0 %v397
      %428 = vmatprep.subr.bf16.mxu0 0
      %429 = vmatpush2.bf16.msra.mxu0 0
      %430 = vmatprep.subr.bf16.mxu0 0
      %431 = vmatpush2.bf16.msra.mxu0 0
      %432 = vmatprep.subr.bf16.mxu0 0
      %433 = vmatpush2.bf16.msra.mxu0 0
      %434 = vmatprep.subr.bf16.mxu0 0
      %435 = vmatpush2.bf16.msra.mxu0 0
      %436 = vmatprep.subr.bf16.mxu0 0
      %437 = vmatpush2.bf16.msra.mxu0 0
      %438 = vmatprep.subr.bf16.mxu0 0
      %439 = vmatpush2.bf16.msra.mxu0 0
      %440 = vmatprep.subr.bf16.mxu0 0
      %441 = vmatpush2.bf16.msra.mxu0 0
      %442 = vmatprep.subr.bf16.mxu0 0
      %443 = vmatpush2.bf16.msra.mxu0 0
      %444 = vmatprep.mubr.bf16.mxu0 0
      %445 = vmatmul.mubr.bf16.gmra.mxu0 %v407
      %v446 = vpop.f32.mrf.mxu0
      %v447 = vadd.f32 %v371, %v446
      %v448 = vpop.f32.mrf.mxu0
      %v449 = vpop.f32.mrf.mxu0
      %v450 = vadd.f32 %v371, %v449
      %v451 = vpop.f32.mrf.mxu0
      %452 = vmatprep.mubr.bf16.mxu0 0
      %453 = vmatmul.mubr.bf16.gmra.mxu0 %v410
      %v454 = vpop.f32.mrf.mxu0
      %v455 = vadd.f32 %v371, %v454
      %v456 = vpop.f32.mrf.mxu0
      %v457 = vpop.f32.mrf.mxu0
      %v458 = vpop.f32.mrf.mxu0
      %459 = vdwg.mxu0
      %v460 = vpack.c.bf16 %v450, %v447
      %v461 = vpack.c.bf16 %v455, %v455
      %v462 = vld [vmem:[%s3] sm:$0xf]
      %v463 = vld [vmem:[%s3 + $0x4] sm:$0xf]
      %v464 = vld [vmem:[%s3 + $0x8] sm:$0xf]
      %v465 = vld [vmem:[%s3 + $0xc] sm:$0xf]
      %v466 = vld [vmem:[%s3 + $0x10] sm:$0x1]
      %v472 = vunpack.c.l.b16 %v462
      %v473 = vunpack.c.l.b16 %v463
      %v474 = vunpack.c.l.b16 %v464
      %v475 = vunpack.c.l.b16 %v465
      %v476 = vunpack.c.l.b16 %v466
      %v477 = vpack.c.b16 %v473, %v472
      %v478 = vpack.c.b16 %v475, %v474
      %v479 = vpack.c.b16 %v476, %v476
      %vm480 = vcmask 130048
      %v482 = vsel %vm480, %v460, 0
      %v485 = vsel %vm480, %v461, 0
      %v488 = vsel %vm480, %v477, 0
      %v491 = vsel %vm480, %v478, 0
      %v494 = vsel %vm480, %v479, 0
      %496 = vmatprep.subr.bf16.mxu0 0
      %497 = vmatpush1.bf16.xpose.msra.mxu0 0
      %498 = vmatprep.subr.bf16.mxu0 0
      %499 = vmatpush1.bf16.xpose.msra.mxu0 0
      %500 = vmatprep.subr.bf16.mxu0 0
      %501 = vmatpush1.bf16.xpose.msra.mxu0 0
      %502 = vmatprep.subr.bf16.mxu0 0
      %503 = vmatpush1.bf16.xpose.msra.mxu0 0
      %504 = vmatprep.subr.bf16.mxu0 0
      %505 = vmatpush1.bf16.xpose.msra.mxu0 0
      %506 = vmatprep.subr.bf16.mxu0 0
      %507 = vmatpush1.bf16.xpose.msra.mxu0 %v494
      %508 = vmatprep.subr.bf16.mxu0 0
      %509 = vmatpush1.bf16.xpose.msra.mxu0 %v491
      %510 = vmatprep.subr.bf16.mxu0 0
      %511 = vmatpush1.bf16.xpose.msra.mxu0 %v488
      %512 = vmatprep.subr.bf16.mxu0 0
      %513 = vmatpush2.bf16.xpose.msra.mxu0 0
      %514 = vmatprep.subr.bf16.mxu0 0
      %515 = vmatpush2.bf16.xpose.msra.mxu0 0
      %516 = vmatprep.subr.bf16.mxu0 0
      %517 = vmatpush2.bf16.xpose.msra.mxu0 0
      %518 = vmatprep.subr.bf16.mxu0 0
      %519 = vmatpush2.bf16.xpose.msra.mxu0 0
      %520 = vmatprep.subr.bf16.mxu0 0
      %521 = vmatpush2.bf16.xpose.msra.mxu0 0
      %522 = vmatprep.subr.bf16.mxu0 0
      %523 = vmatpush2.bf16.xpose.msra.mxu0 0
      %524 = vmatprep.subr.bf16.mxu0 0
      %525 = vmatpush2.bf16.xpose.msra.mxu0 0
      %526 = vmatprep.subr.bf16.mxu0 0
      %527 = vmatpush2.bf16.xpose.msra.mxu0 0
      %528 = vmatprep.mubr.bf16.mxu0 0
      %529 = vmatmul.mubr.bf16.gmra.mxu0 %v482
      %v530 = vpop.f32.mrf.mxu0
      %v531 = vadd.f32 0.0, %v530
      %v532 = vpop.f32.mrf.mxu0
      %v533 = vpop.f32.mrf.mxu0
      %v534 = vadd.f32 0.0, %v533
      %v535 = vpop.f32.mrf.mxu0
      %536 = vmatprep.mubr.bf16.mxu0 0
      %537 = vmatmul.mubr.bf16.gmra.mxu0 %v485
      %v538 = vpop.f32.mrf.mxu0
      %v539 = vadd.f32 0.0, %v538
      %v540 = vpop.f32.mrf.mxu0
      %v541 = vpop.f32.mrf.mxu0
      %v542 = vpop.f32.mrf.mxu0
      %543 = vdwg.mxu0
      %v544 = vmul.f32 %v531, 0.35355338
      %v545 = vmul.f32 %v534, 0.35355338
      %v546 = vmul.f32 %v539, 0.35355338
      %v547 = vld [vmem:[%s4] sm:$0xf]
      %v548 = vld [vmem:[%s4 + $0x4] sm:$0xf]
      %v549 = vld [vmem:[%s4 + $0x8] sm:$0xf]
      %v550 = vld [vmem:[%s4 + $0xc] sm:$0xf]
      %v551 = vld [vmem:[%s4 + $0x10] sm:$0xf]
      %v552 = vld [vmem:[%s4 + $0x14] sm:$0xf]
      %v553 = vld [vmem:[%s4 + $0x18] sm:$0xf]
      %v554 = vld [vmem:[%s4 + $0x1c] sm:$0xf]
      %v555 = vld [vmem:[%s4 + $0x20] sm:$0xf]
      %v556 = vld [vmem:[%s4 + $0x24] sm:$0xf]
      %v557 = vld [vmem:[%s4 + $0x28] sm:$0xf]
      %v558 = vld [vmem:[%s4 + $0x2c] sm:$0xf]
      %561 = vrot.lane.b32.xlu0 %v460, 112
      %v562 = vpop.permute.xlu0 %561
      %563 = vrot.lane.b32.xlu0 %v461, 112
      %v564 = vpop.permute.xlu0 %563
      %v577 = vunpack.c.l.b16 %v547
      %v578 = vunpack.c.l.b16 %v548
      %v579 = vunpack.c.l.b16 %v549
      %v580 = vunpack.c.l.b16 %v550
      %v581 = vunpack.c.l.b16 %v551
      %v582 = vunpack.c.l.b16 %v552
      %v583 = vunpack.c.l.b16 %v553
      %v584 = vunpack.c.l.b16 %v554
      %v585 = vunpack.c.l.b16 %v555
      %v586 = vunpack.c.l.b16 %v556
      %v587 = vunpack.c.l.b16 %v557
      %v588 = vunpack.c.l.b16 %v558
      %v589 = vpack.c.b16 %v578, %v577
      %v590 = vpack.c.b16 %v580, %v579
      %v591 = vpack.c.b16 %v582, %v581
      %v592 = vpack.c.b16 %v584, %v583
      %v593 = vpack.c.b16 %v586, %v585
      %v594 = vpack.c.b16 %v588, %v587
      %v596 = vsel %vm480, %v562, 0
      %v599 = vsel %vm480, %v564, 0
      %v602 = vsel %vm480, %v589, 0
      %v605 = vsel %vm480, %v590, 0
      %v608 = vsel %vm480, %v591, 0
      %v611 = vsel %vm480, %v592, 0
      %v614 = vsel %vm480, %v593, 0
      %v617 = vsel %vm480, %v594, 0
      %619 = vmatprep.subr.bf16.mxu0 0
      %620 = vmatpush1.bf16.xpose.msra.mxu0 0
      %621 = vmatprep.subr.bf16.mxu0 0
      %622 = vmatpush1.bf16.xpose.msra.mxu0 0
      %623 = vmatprep.subr.bf16.mxu0 0
      %624 = vmatpush1.bf16.xpose.msra.mxu0 %v617
      %625 = vmatprep.subr.bf16.mxu0 0
      %626 = vmatpush1.bf16.xpose.msra.mxu0 %v614
      %627 = vmatprep.subr.bf16.mxu0 0
      %628 = vmatpush1.bf16.xpose.msra.mxu0 %v611
      %629 = vmatprep.subr.bf16.mxu0 0
      %630 = vmatpush1.bf16.xpose.msra.mxu0 %v608
      %631 = vmatprep.subr.bf16.mxu0 0
      %632 = vmatpush1.bf16.xpose.msra.mxu0 %v605
      %633 = vmatprep.subr.bf16.mxu0 0
      %634 = vmatpush1.bf16.xpose.msra.mxu0 %v602
      %635 = vmatprep.subr.bf16.mxu0 0
      %636 = vmatpush2.bf16.xpose.msra.mxu0 0
      %637 = vmatprep.subr.bf16.mxu0 0
      %638 = vmatpush2.bf16.xpose.msra.mxu0 0
      %639 = vmatprep.subr.bf16.mxu0 0
      %640 = vmatpush2.bf16.xpose.msra.mxu0 0
      %641 = vmatprep.subr.bf16.mxu0 0
      %642 = vmatpush2.bf16.xpose.msra.mxu0 0
      %643 = vmatprep.subr.bf16.mxu0 0
      %644 = vmatpush2.bf16.xpose.msra.mxu0 0
      %645 = vmatprep.subr.bf16.mxu0 0
      %646 = vmatpush2.bf16.xpose.msra.mxu0 0
      %647 = vmatprep.subr.bf16.mxu0 0
      %648 = vmatpush2.bf16.xpose.msra.mxu0 0
      %649 = vmatprep.subr.bf16.mxu0 0
      %650 = vmatpush2.bf16.xpose.msra.mxu0 0
      %651 = vmatprep.mubr.bf16.mxu0 0
      %652 = vmatmul.mubr.bf16.gmra.mxu0 %v596
      %v653 = vpop.f32.mrf.mxu0
      %v654 = vadd.f32 0.0, %v653
      %v655 = vpop.f32.mrf.mxu0
      %v656 = vpop.f32.mrf.mxu0
      %v657 = vadd.f32 0.0, %v656
      %v658 = vpop.f32.mrf.mxu0
      %659 = vmatprep.mubr.bf16.mxu0 0
      %660 = vmatmul.mubr.bf16.gmra.mxu0 %v599
      %v661 = vpop.f32.mrf.mxu0
      %v662 = vadd.f32 0.0, %v661
      %v663 = vpop.f32.mrf.mxu0
      %v664 = vpop.f32.mrf.mxu0
      %v665 = vpop.f32.mrf.mxu0
      %666 = vdwg.mxu0
      %v667 = vmul.f32 %v654, 0.25
      %v668 = vmul.f32 %v657, 0.25
      %v669 = vmul.f32 %v662, 0.25
      %671 = vrot.lane.b32.xlu0 %v531, 112
      %v672 = vpop.permute.xlu0 %671
      %v674 = vmul.f32 %v544, %v672
      %v675 = vsel %vm480, %v674, 0.0
      %v676 = vrot.slane %v675, 4
      %v677 = vadd.f32 %v675, %v676
      %v678 = vrot.slane %v677, 2
      %v679 = vadd.f32 %v677, %v678
      %v680 = vrot.slane %v679, 1
      %v681 = vadd.f32 %v679, %v680
      %683 = vrot.lane.b32.xlu0 %v654, 112
      %v684 = vpop.permute.xlu0 %683
      %v686 = vmul.f32 %v667, %v684
      %v687 = vsel %vm480, %v686, 0.0
      %688 = vadd.xlane.f32.xlu0 %v687
      %v689 = vpop.xlane.xlu0 %688
      %691 = vrot.lane.b32.xlu0 %v534, 112
      %v692 = vpop.permute.xlu0 %691
      %v694 = vmul.f32 %v544, %v692
      %v695 = vsel %vm480, %v694, 0.0
      %v696 = vrot.slane %v695, 4
      %v697 = vadd.f32 %v695, %v696
      %v698 = vrot.slane %v697, 2
      %v699 = vadd.f32 %v697, %v698
      %v700 = vrot.slane %v699, 1
      %v701 = vadd.f32 %v699, %v700
      %703 = vrot.lane.b32.xlu0 %v657, 112
      %v704 = vpop.permute.xlu0 %703
      %v706 = vmul.f32 %v667, %v704
      %v707 = vsel %vm480, %v706, 0.0
      %708 = vadd.xlane.f32.xlu0 %v707
      %v709 = vpop.xlane.xlu0 %708
      %711 = vrot.lane.b32.xlu0 %v539, 112
      %v712 = vpop.permute.xlu0 %711
      %v714 = vmul.f32 %v544, %v712
      %v715 = vsel %vm480, %v714, 0.0
      %v716 = vrot.slane %v715, 4
      %v717 = vadd.f32 %v715, %v716
      %v718 = vrot.slane %v717, 2
      %v719 = vadd.f32 %v717, %v718
      %v720 = vrot.slane %v719, 1
      %v721 = vadd.f32 %v719, %v720
      %723 = vrot.lane.b32.xlu0 %v662, 112
      %v724 = vpop.permute.xlu0 %723
      %v726 = vmul.f32 %v667, %v724
      %v727 = vsel %vm480, %v726, 0.0
      %728 = vadd.xlane.f32.xlu0 %v727
      %v729 = vpop.xlane.xlu0 %728
      %v730 = vmax.f32 %v681, %v701
      %v731 = vmax.f32 %v730, %v721
      %v732 = vsub.f32 %v681, %v731
      %v733 = vmul.f32 %v732, 1.442695
      %v734 = vpow.pop %v733
      %v735 = vsub.f32 %v701, %v731
      %v736 = vmul.f32 %v735, 1.442695
      %v737 = vpow.pop %v736
      %v738 = vsub.f32 %v721, %v731
      %v739 = vmul.f32 %v738, 1.442695
      %v740 = vpow.pop %v739
      %v741 = vadd.f32 %v734, %v737
      %v742 = vadd.f32 %v741, %v740
      %v743 = vrcp.pop %v742
      %v744 = vmul.f32 %v734, %v743
      %v745 = vmul.f32 %v737, %v743
      %v746 = vmul.f32 %v740, %v743
      %v747 = vmax.f32 %v689, %v709
      %v748 = vmax.f32 %v747, %v729
      %v749 = vsub.f32 %v689, %v748
      %v750 = vmul.f32 %v749, 1.442695
      %v751 = vpow.pop %v750
      %v752 = vsub.f32 %v709, %v748
      %v753 = vmul.f32 %v752, 1.442695
      %v754 = vpow.pop %v753
      %v755 = vsub.f32 %v729, %v748
      %v756 = vmul.f32 %v755, 1.442695
      %v757 = vpow.pop %v756
      %v758 = vadd.f32 %v751, %v754
      %v759 = vadd.f32 %v758, %v757
      %v760 = vrcp.pop %v759
      %v761 = vmul.f32 %v751, %v760
      %v762 = vmul.f32 %v754, %v760
      %v763 = vmul.f32 %v757, %v760
      %764 = vset.pattern.permute.xlu0 32
      %765 = vperm.xlu0 %764, %v531
      %v766 = vpop.permute.xlu0 %765
      %v768 = vmul.f32 %v744, %v766
      %v769 = vmul.f32 %v761, %v654
      %770 = vset.pattern.permute.xlu0 32
      %771 = vperm.xlu0 %770, %v534
      %v772 = vpop.permute.xlu0 %771
      %v774 = vmul.f32 %v745, %v772
      %v775 = vadd.f32 %v768, %v774
      %v776 = vmul.f32 %v762, %v657
      %v777 = vadd.f32 %v769, %v776
      %778 = vset.pattern.permute.xlu0 32
      %779 = vperm.xlu0 %778, %v539
      %v780 = vpop.permute.xlu0 %779
      %v782 = vmul.f32 %v746, %v780
      %v783 = vadd.f32 %v775, %v782
      %v784 = vmul.f32 %v763, %v662
      %v785 = vadd.f32 %v777, %v784
      %v786 = vmul.f32 %v545, %v672
      %v787 = vsel %vm480, %v786, 0.0
      %v788 = vrot.slane %v787, 4
      %v789 = vadd.f32 %v787, %v788
      %v790 = vrot.slane %v789, 2
      %v791 = vadd.f32 %v789, %v790
      %v792 = vrot.slane %v791, 1
      %v793 = vadd.f32 %v791, %v792
      %v794 = vmul.f32 %v668, %v684
      %v795 = vsel %vm480, %v794, 0.0
      %796 = vadd.xlane.f32.xlu0 %v795
      %v797 = vpop.xlane.xlu0 %796
      %v798 = vmul.f32 %v545, %v692
      %v799 = vsel %vm480, %v798, 0.0
      %v800 = vrot.slane %v799, 4
      %v801 = vadd.f32 %v799, %v800
      %v802 = vrot.slane %v801, 2
      %v803 = vadd.f32 %v801, %v802
      %v804 = vrot.slane %v803, 1
      %v805 = vadd.f32 %v803, %v804
      %v806 = vmul.f32 %v668, %v704
      %v807 = vsel %vm480, %v806, 0.0
      %808 = vadd.xlane.f32.xlu0 %v807
      %v809 = vpop.xlane.xlu0 %808
      %v810 = vmul.f32 %v545, %v712
      %v811 = vsel %vm480, %v810, 0.0
      %v812 = vrot.slane %v811, 4
      %v813 = vadd.f32 %v811, %v812
      %v814 = vrot.slane %v813, 2
      %v815 = vadd.f32 %v813, %v814
      %v816 = vrot.slane %v815, 1
      %v817 = vadd.f32 %v815, %v816
      %v818 = vmul.f32 %v668, %v724
      %v819 = vsel %vm480, %v818, 0.0
      %820 = vadd.xlane.f32.xlu0 %v819
      %v821 = vpop.xlane.xlu0 %820
      %v822 = vmax.f32 %v793, %v805
      %v823 = vmax.f32 %v822, %v817
      %v824 = vsub.f32 %v793, %v823
      %v825 = vmul.f32 %v824, 1.442695
      %v826 = vpow.pop %v825
      %v827 = vsub.f32 %v805, %v823
      %v828 = vmul.f32 %v827, 1.442695
      %v829 = vpow.pop %v828
      %v830 = vsub.f32 %v817, %v823
      %v831 = vmul.f32 %v830, 1.442695
      %v832 = vpow.pop %v831
      %v833 = vadd.f32 %v826, %v829
      %v834 = vadd.f32 %v833, %v832
      %v835 = vrcp.pop %v834
      %v836 = vmul.f32 %v826, %v835
      %v837 = vmul.f32 %v829, %v835
      %v838 = vmul.f32 %v832, %v835
      %v839 = vmax.f32 %v797, %v809
      %v840 = vmax.f32 %v839, %v821
      %v841 = vsub.f32 %v797, %v840
      %v842 = vmul.f32 %v841, 1.442695
      %v843 = vpow.pop %v842
      %v844 = vsub.f32 %v809, %v840
      %v845 = vmul.f32 %v844, 1.442695
      %v846 = vpow.pop %v845
      %v847 = vsub.f32 %v821, %v840
      %v848 = vmul.f32 %v847, 1.442695
      %v849 = vpow.pop %v848
      %v850 = vadd.f32 %v843, %v846
      %v851 = vadd.f32 %v850, %v849
      %v852 = vrcp.pop %v851
      %v853 = vmul.f32 %v843, %v852
      %v854 = vmul.f32 %v846, %v852
      %v855 = vmul.f32 %v849, %v852
      %v856 = vmul.f32 %v836, %v766
      %v857 = vmul.f32 %v853, %v654
      %v858 = vmul.f32 %v837, %v772
      %v859 = vadd.f32 %v856, %v858
      %v860 = vmul.f32 %v854, %v657
      %v861 = vadd.f32 %v857, %v860
      %v862 = vmul.f32 %v838, %v780
      %v863 = vadd.f32 %v859, %v862
      %v864 = vmul.f32 %v855, %v662
      %v865 = vadd.f32 %v861, %v864
      %v866 = vmul.f32 %v546, %v672
      %v867 = vsel %vm480, %v866, 0.0
      %v868 = vrot.slane %v867, 4
      %v869 = vadd.f32 %v867, %v868
      %v870 = vrot.slane %v869, 2
      %v871 = vadd.f32 %v869, %v870
      %v872 = vrot.slane %v871, 1
      %v873 = vadd.f32 %v871, %v872
      %v874 = vmul.f32 %v669, %v684
      %v875 = vsel %vm480, %v874, 0.0
      %876 = vadd.xlane.f32.xlu0 %v875
      %v877 = vpop.xlane.xlu0 %876
      %v878 = vmul.f32 %v546, %v692
      %v879 = vsel %vm480, %v878, 0.0
      %v880 = vrot.slane %v879, 4
      %v881 = vadd.f32 %v879, %v880
      %v882 = vrot.slane %v881, 2
      %v883 = vadd.f32 %v881, %v882
      %v884 = vrot.slane %v883, 1
      %v885 = vadd.f32 %v883, %v884
      %v886 = vmul.f32 %v669, %v704
      %v887 = vsel %vm480, %v886, 0.0
      %888 = vadd.xlane.f32.xlu0 %v887
      %v889 = vpop.xlane.xlu0 %888
      %v890 = vmul.f32 %v546, %v712
      %v891 = vsel %vm480, %v890, 0.0
      %v892 = vrot.slane %v891, 4
      %v893 = vadd.f32 %v891, %v892
      %v894 = vrot.slane %v893, 2
      %v895 = vadd.f32 %v893, %v894
      %v896 = vrot.slane %v895, 1
      %v897 = vadd.f32 %v895, %v896
      %v898 = vmul.f32 %v669, %v724
      %v899 = vsel %vm480, %v898, 0.0
      %900 = vadd.xlane.f32.xlu0 %v899
      %v901 = vpop.xlane.xlu0 %900
      %v902 = vmax.f32 %v873, %v885
      %v903 = vmax.f32 %v902, %v897
      %v904 = vsub.f32 %v873, %v903
      %v905 = vmul.f32 %v904, 1.442695
      %v906 = vpow.pop %v905
      %v907 = vsub.f32 %v885, %v903
      %v908 = vmul.f32 %v907, 1.442695
      %v909 = vpow.pop %v908
      %v910 = vsub.f32 %v897, %v903
      %v911 = vmul.f32 %v910, 1.442695
      %v912 = vpow.pop %v911
      %v913 = vadd.f32 %v906, %v909
      %v914 = vadd.f32 %v913, %v912
      %v915 = vrcp.pop %v914
      %v916 = vmul.f32 %v906, %v915
      %v917 = vmul.f32 %v909, %v915
      %v918 = vmul.f32 %v912, %v915
      %v919 = vmax.f32 %v877, %v889
      %v920 = vmax.f32 %v919, %v901
      %v921 = vsub.f32 %v877, %v920
      %v922 = vmul.f32 %v921, 1.442695
      %v923 = vpow.pop %v922
      %v924 = vsub.f32 %v889, %v920
      %v925 = vmul.f32 %v924, 1.442695
      %v926 = vpow.pop %v925
      %v927 = vsub.f32 %v901, %v920
      %v928 = vmul.f32 %v927, 1.442695
      %v929 = vpow.pop %v928
      %v930 = vadd.f32 %v923, %v926
      %v931 = vadd.f32 %v930, %v929
      %v932 = vrcp.pop %v931
      %v933 = vmul.f32 %v923, %v932
      %v934 = vmul.f32 %v926, %v932
      %v935 = vmul.f32 %v929, %v932
      %v936 = vmul.f32 %v916, %v766
      %v937 = vmul.f32 %v933, %v654
      %v938 = vmul.f32 %v917, %v772
      %v939 = vadd.f32 %v936, %v938
      %v940 = vmul.f32 %v934, %v657
      %v941 = vadd.f32 %v937, %v940
      %v942 = vmul.f32 %v918, %v780
      %v943 = vadd.f32 %v939, %v942
      %v944 = vmul.f32 %v935, %v662
      %v945 = vadd.f32 %v941, %v944
      %947 = vrot.lane.b32.xlu0 %v745, 16
      %v948 = vpop.permute.xlu0 %947
      %951 = vrot.lane.b32.xlu0 %v746, 32
      %v952 = vpop.permute.xlu0 %951
      %955 = vrot.lane.b32.xlu0 %v836, 48
      %v956 = vpop.permute.xlu0 %955
      %959 = vrot.lane.b32.xlu0 %v837, 64
      %v960 = vpop.permute.xlu0 %959
      %963 = vrot.lane.b32.xlu0 %v838, 80
      %v964 = vpop.permute.xlu0 %963
      %967 = vrot.lane.b32.xlu0 %v916, 96
      %v968 = vpop.permute.xlu0 %967
      %971 = vrot.lane.b32.xlu0 %v917, 112
      %v972 = vpop.permute.xlu0 %971
      %v974 = vsel %vm480, %v744, %v948
      %vm975 = vcmask 261120
      %v976 = vsel %vm975, %v974, %v952
      %vm977 = vcmask 392192
      %v978 = vsel %vm977, %v976, %v956
      %v979 = vsel %vm405, %v978, %v960
      %vm980 = vcmask 654336
      %v981 = vsel %vm980, %v979, %v964
      %vm982 = vcmask 785408
      %v983 = vsel %vm982, %v981, %v968
      %vm984 = vcmask 916480
      %v985 = vsel %vm984, %v983, %v972
      %v988 = vcombine.low %v985, %v918
      %v990 = vunpack.c.l.s4 1966171168
      %v991 = vunpack.c.0.s8 %v990
      %v992 = vlaneseq
      %v993 = vshrl.u32 %v992, 7
      %v994 = vsub.s32 %v991, %v993
      %v995 = vrot.slane %v988, %v994
      %v997 = vunpack.c.l.s4 1966171168
      %v998 = vunpack.c.0.s8 %v997
      %v999 = vlaneseq
      %v1000 = vshrl.u32 %v999, 7
      %v1001 = vsub.s32 %v998, %v1000
      %v1002 = vrot.slane %v995, %v1001
      %v1004 = vlaneseq
      %vm1005 = vcmp.ge.s32.totalorder %v1004, 0
      %vm1006 = vcmp.lt.s32.totalorder %v1004, 144
      %vm1007 = vmand %vm1005, %vm1006
      %1008 = vst.msk [vmem:[%s349] sm:$0x3] %vm1007, %v1002
      %vm1009 = vcmask 7168
      %v1010 = vsel %vm1009, %v761, %v762
      %vm1011 = vcmask 15360
      %v1012 = vsel %vm1011, %v1010, %v763
      %vm1013 = vcmask 23552
      %v1014 = vsel %vm1013, %v1012, %v853
      %vm1015 = vcmask 31744
      %v1016 = vsel %vm1015, %v1014, %v854
      %vm1017 = vcmask 39936
      %v1018 = vsel %vm1017, %v1016, %v855
      %vm1019 = vcmask 48128
      %v1020 = vsel %vm1019, %v1018, %v933
      %vm1021 = vcmask 56320
      %v1022 = vsel %vm1021, %v1020, %v934
      %vm1023 = vcmask 64512
      %v1024 = vsel %vm1023, %v1022, %v935
      %vm1025 = vcmask 72704
      %1026 = vst.msk [vmem:[%s353] sm:$0xff] %vm1025, %v1024
      %v1027 = vpack.c.bf16 %v863, %v783
      %v1028 = vpack.c.bf16 %v943, %v943
      %v1029 = vld [vmem:[%s5] sm:$0xf]
      %v1030 = vld [vmem:[%s5 + $0x4] sm:$0xf]
      %v1031 = vld [vmem:[%s6] sm:$0x1]
      %v1033 = vlaneseq
      %v1034 = vshrl.u32 %v1033, 7
      %v1035 = vsub.s32 0, %v1034
      %v1036 = vrot.slane %v1031, %v1035
      %v1040 = vunpack.c.l.b16 %v1029
      %v1041 = vunpack.c.l.b16 %v1030
      %v1042 = vpack.c.b16 %v1041, %v1040
      %v1045 = vsel %vm480, %v1027, 0
      %v1048 = vsel %vm480, %v1028, 0
      %1050 = vmatprep.subr.bf16.mxu0 0
      %1051 = vmatpush1.bf16.msra.mxu0 0
      %1052 = vmatprep.subr.bf16.mxu0 0
      %1053 = vmatpush1.bf16.msra.mxu0 0
      %1054 = vmatprep.subr.bf16.mxu0 0
      %1055 = vmatpush1.bf16.msra.mxu0 0
      %1056 = vmatprep.subr.bf16.mxu0 0
      %1057 = vmatpush1.bf16.msra.mxu0 0
      %1058 = vmatprep.subr.bf16.mxu0 0
      %1059 = vmatpush1.bf16.msra.mxu0 0
      %1060 = vmatprep.subr.bf16.mxu0 0
      %1061 = vmatpush1.bf16.msra.mxu0 0
      %1062 = vmatprep.subr.bf16.mxu0 0
      %1063 = vmatpush1.bf16.msra.mxu0 0
      %1064 = vmatprep.subr.bf16.mxu0 0
      %1065 = vmatpush1.bf16.msra.mxu0 %v1042
      %1066 = vmatprep.subr.bf16.mxu0 0
      %1067 = vmatpush2.bf16.msra.mxu0 0
      %1068 = vmatprep.subr.bf16.mxu0 0
      %1069 = vmatpush2.bf16.msra.mxu0 0
      %1070 = vmatprep.subr.bf16.mxu0 0
      %1071 = vmatpush2.bf16.msra.mxu0 0
      %1072 = vmatprep.subr.bf16.mxu0 0
      %1073 = vmatpush2.bf16.msra.mxu0 0
      %1074 = vmatprep.subr.bf16.mxu0 0
      %1075 = vmatpush2.bf16.msra.mxu0 0
      %1076 = vmatprep.subr.bf16.mxu0 0
      %1077 = vmatpush2.bf16.msra.mxu0 0
      %1078 = vmatprep.subr.bf16.mxu0 0
      %1079 = vmatpush2.bf16.msra.mxu0 0
      %1080 = vmatprep.subr.bf16.mxu0 0
      %1081 = vmatpush2.bf16.msra.mxu0 0
      %1082 = vmatprep.mubr.bf16.mxu0 0
      %1083 = vmatmul.mubr.bf16.gmra.mxu0 %v1045
      %v1084 = vpop.f32.mrf.mxu0
      %v1085 = vadd.f32 %v1036, %v1084
      %v1086 = vpop.f32.mrf.mxu0
      %v1087 = vpop.f32.mrf.mxu0
      %v1088 = vadd.f32 %v1036, %v1087
      %v1089 = vpop.f32.mrf.mxu0
      %1090 = vmatprep.mubr.bf16.mxu0 0
      %1091 = vmatmul.mubr.bf16.gmra.mxu0 %v1048
      %v1092 = vpop.f32.mrf.mxu0
      %v1093 = vadd.f32 %v1036, %v1092
      %v1094 = vpop.f32.mrf.mxu0
      %v1095 = vpop.f32.mrf.mxu0
      %v1096 = vpop.f32.mrf.mxu0
      %1097 = vdwg.mxu0
      %1101 = vrot.lane.b32.xlu0 %v785, 96
      %v1102 = vpop.permute.xlu0 %1101
      %1103 = vrot.lane.b32.xlu0 %v865, 96
      %v1104 = vpop.permute.xlu0 %1103
      %1105 = vrot.lane.b32.xlu0 %v945, 96
      %v1106 = vpop.permute.xlu0 %1105
      %v1110 = vadd.f32 %v1085, %v1102
      %v1111 = vadd.f32 %v1088, %v1104
      %v1112 = vadd.f32 %v1093, %v1106
      %1113 = vst.msk [vmem:[%s345] sm:$0xff] %vm405, %v1110
      %1114 = vst.msk [vmem:[%s345 + $0x8] sm:$0xff] %vm405, %v1111
      %1115 = vst.msk [vmem:[%s345 + $0x10] sm:$0xff] %vm405, %v1112
      %p1116 = scmp.lt.s32.totalorder %s21, 1
      %s1117 = scalar_select %p1116, %s21, 1
      %s1118 = smul.addr %s1117, 3
      %s1119 = smul.addr %s1118, 8
      %s1120 = scalar_lea.vmem %s7, %s1119
      %p1121 = scmp.lt.s32.totalorder %s21, 1
      %s1122 = scalar_select %p1121, %s21, 1
      %s1123 = smul.addr %s1122, 2
      %s1124 = scalar_lea.vmem %s8, %s1123
      %p1125 = scmp.lt.s32.totalorder %s21, 1
      %s1126 = scalar_select %p1125, %s21, 1
      %s1127 = smul.addr %s1126, 8
      %s1128 = scalar_lea.vmem %s9, %s1127
      // Predicated region
      $region49: #{lgconv_forward.1} parent=47 // pred_check
        %p1129 = pneg %p191
      $region50: #{lgconv_forward.1} parent=47 // pred_check_branch
        %1131 = sbr.rel (%p1129) target = $region52
      $region51: #{lgconv_forward.1} parent=47 // pred_region
        _
      $region52: #{lgconv_forward.1} parent=47 // pred_fallthru
        _
      // Predicated region
      $region53: #{lgconv_forward.1} parent=47 // pred_check
        %p1132 = pneg %p217
      $region54: #{lgconv_forward.1} parent=47 // pred_check_branch
        %1134 = sbr.rel (%p1132) target = $region56
      $region55: #{lgconv_forward.1} parent=47 // pred_region
        _
      $region56: #{lgconv_forward.1} parent=47 // pred_fallthru
        _
      // Predicated region
      $region57: #{lgconv_forward.1} parent=47 // pred_check
        %p1135 = pneg %p243
      $region58: #{lgconv_forward.1} parent=47 // pred_check_branch
        %1137 = sbr.rel (%p1135) target = $region60
      $region59: #{lgconv_forward.1} parent=47 // pred_region
        _
      $region60: #{lgconv_forward.1} parent=47 // pred_fallthru
        _
    $region48: #{lgconv_forward.1} parent=5 // pred_fallthru
      _
    %p1138 = scmp.le.s32.totalorder 2, %s16
    // Predicated region
    $region61: #{lgconv_forward.1} parent=5 // pred_check
      %p1139 = pneg %p1138
    $region62: #{lgconv_forward.1} parent=5 // pred_check_branch
      %1141 = sbr.rel (%p1139) target = $region64
    $region63: #{lgconv_forward.1} parent=5 // pred_region
      %s1142 = ssub.s32 %s16, 2
      // Predicated region
      $region65: #{lgconv_forward.1} parent=63 // pred_check
        %p1143 = pneg %p197
      $region66: #{lgconv_forward.1} parent=63 // pred_check_branch
        %1145 = sbr.rel (%p1143) target = $region68
      $region67: #{lgconv_forward.1} parent=63 // pred_region
        %p1146 = scmp.lt.s32.totalorder %s22, 1
        %s1147 = scalar_select %p1146, %s22, 1
        %s1148 = smul.addr %s1147, 3
        %s1149 = smul.addr %s1148, 8
        %s1150 = scalar_lea.vmem %s7, %s1149
      $region68: #{lgconv_forward.1} parent=63 // pred_fallthru
        _
      // Predicated region
      $region69: #{lgconv_forward.1} parent=63 // pred_check
        %p1151 = pneg %p223
      $region70: #{lgconv_forward.1} parent=63 // pred_check_branch
        %1153 = sbr.rel (%p1151) target = $region72
      $region71: #{lgconv_forward.1} parent=63 // pred_region
        %p1154 = scmp.lt.s32.totalorder %s22, 1
        %s1155 = scalar_select %p1154, %s22, 1
        %s1156 = smul.addr %s1155, 2
        %s1157 = scalar_lea.vmem %s8, %s1156
      $region72: #{lgconv_forward.1} parent=63 // pred_fallthru
        _
      // Predicated region
      $region73: #{lgconv_forward.1} parent=63 // pred_check
        %p1158 = pneg %p249
      $region74: #{lgconv_forward.1} parent=63 // pred_check_branch
        %1160 = sbr.rel (%p1158) target = $region76
      $region75: #{lgconv_forward.1} parent=63 // pred_region
        %p1161 = scmp.lt.s32.totalorder %s22, 1
        %s1162 = scalar_select %p1161, %s22, 1
        %s1163 = smul.addr %s1162, 8
        %s1164 = scalar_lea.vmem %s9, %s1163
      $region76: #{lgconv_forward.1} parent=63 // pred_fallthru
        _
    $region64: #{lgconv_forward.1} parent=5 // pred_fallthru
      _
  $region6: #{lgconv_forward.1} parent=0 // loop_footer
    %s20 = sadd.s32 1, %s16
  $region7: #{lgconv_forward.1} parent=0 // loop_footer_branch
    %15 = sbr.rel target = $region3
  $region8: #{lgconv_forward.1} parent=0 // loop_exit
    _

</llo_original>
